<compile_context>
chip_gen: v5e
topology: v5e:2x2
jax: 0.10.0
libtpu: 0.0.40
codegen_flags: <defaults>
</compile_context>

<pallas_src>
import functools

import jax
import jax.numpy as jnp
from jax.experimental import pallas as pl
from jax.experimental.pallas import tpu as pltpu

EPS = 1e-5  # PyTorch InstanceNorm2d default eps


def _instance_norm(t):
    """InstanceNorm2d(affine=False), two-pass statistics, f32 math.

    t: (H, W, C) float32 -> (H, W, C) float32 (biased variance, eps=1e-5).
    The centered tensor is needed for the output anyway, so the two-pass
    variance costs no extra full-tensor traffic vs. the single-pass form.
    """
    inv_n = 1.0 / (t.shape[0] * t.shape[1])
    mean = jnp.sum(t, axis=(0, 1), keepdims=True) * inv_n        # (1, 1, C)
    centered = t - mean
    var = jnp.sum(centered * centered, axis=(0, 1), keepdims=True) * inv_n
    return centered * jax.lax.rsqrt(var + EPS)


def _conv3x3_reflect(t, w_ref, compute_dtype):
    """ReflectionPad2d(1) + Conv2d(C, C, kernel_size=3) (bias folded away).

    t: (H, W, C) float with H, W >= 2.
    w_ref: (3, 3*C, C) ref in `compute_dtype`; the K axis is ordered
           [dw=-1 channels, dw=0 channels, dw=+1 channels].
    Returns (H, W, C) float32 (MXU accumulates in f32).
    """
    H, W, C = t.shape

    # Cast once: all tap buffers (and the merged K=3C tensor) live in
    # compute_dtype (half the VMEM with bf16); accumulation stays f32.
    tc = t.astype(compute_dtype)

    # Reflection along H: concat on the untiled leading axis (cheap copies).
    hp = jnp.concatenate([tc[1:2], tc, tc[H - 2:H - 1]], axis=0)   # (H+2, W, C)

    # Reflection along W: build the three column taps once.
    #   w_m1[:, w] = hp[:, w-1]   (w = 0   -> hp[:, 1],   reflect)
    #   hp  [:, w] = hp[:, w]
    #   w_p1[:, w] = hp[:, w+1]   (w = W-1 -> hp[:, W-2], reflect)
    w_m1 = jnp.concatenate([hp[:, 1:2], hp[:, :W - 1]], axis=1)
    w_p1 = jnp.concatenate([hp[:, 1:W], hp[:, W - 2:W - 1]], axis=1)

    # Merge the dw taps into the contraction axis: (H+2, W, 3C), K = 3C.
    # Accumulation over dw now happens inside the MXU f32 accumulator.
    merged = jnp.concatenate([w_m1, hp, w_p1], axis=-1)            # (H+2, W, 3C)

    # Three matmuls (one per dh); acc is initialized by the first one.
    acc = jnp.einsum("hwk,ko->hwo", merged[0:H], w_ref[0],
                     preferred_element_type=jnp.float32)
    for dh in (1, 2):
        acc = acc + jnp.einsum("hwk,ko->hwo", merged[dh:dh + H], w_ref[dh],
                               preferred_element_type=jnp.float32)
    return acc


def resnet_block_kernel(x_ref, w1_ref, w2_ref, o_ref, *, compute_dtype):
    # x_ref / o_ref: (H, W, C) for the current batch element (batch squeezed).
    # x is NOT kept live across both convs: read it for conv1, re-read it for
    # the residual only (frees ~HWC f32 of VMEM/vreg pressure during conv2).
    h = _conv3x3_reflect(x_ref[...], w1_ref, compute_dtype)

    # InstanceNorm -> ReLU
    h = jnp.maximum(_instance_norm(h), 0.0)

    # ReflectionPad -> Conv3x3 -> InstanceNorm
    h = _conv3x3_reflect(h, w2_ref, compute_dtype)
    h = _instance_norm(h)

    # Skip connection (f32).
    o_ref[...] = (x_ref[...].astype(jnp.float32) + h).astype(o_ref.dtype)


def _merge_weight(w, compute_dtype):
    """PyTorch (Cout, Cin, 3, 3) -> (3 [dh], 3*Cin [dw-major], Cout)."""
    c_out, c_in, kh, kw = w.shape
    assert kh == 3 and kw == 3
    wt = jnp.transpose(w, (2, 3, 1, 0))          # (kH, kW, Cin, Cout)
    return wt.reshape(3, 3 * c_in, c_out).astype(compute_dtype)


def resnet_block(x_nchw, w1, b1, w2, b2, *, compute_dtype=jnp.bfloat16):
    """ResnetBlock forward.

    x_nchw: (B, C, H, W) float32.  w*: (C, C, 3, 3), b*: (C,) (PyTorch layout).
    b1/b2 are accepted for interface parity but intentionally unused: the
    affine-free InstanceNorm subtracts the per-channel spatial mean, which
    cancels a post-conv per-channel bias exactly.
    compute_dtype: dtype of the MXU matmul operands (bf16 recommended on all
    TPU generations); statistics / elementwise math stays float32.
    """
    del b1, b2  # exactly cancelled by InstanceNorm2d(affine=False)
    x = jnp.transpose(x_nchw, (0, 2, 3, 1))                 # NCHW -> NHWC
    B, H, W, C = x.shape
    assert H >= 2 and W >= 2, "ReflectionPad2d(1) requires H, W >= 2"

    w1m = _merge_weight(w1, compute_dtype)                  # (3, 3C, C)
    w2m = _merge_weight(w2, compute_dtype)

    # Scoped-VMEM budget sized from the actual footprint (with 2x headroom),
    # clamped to 64 MiB so the same value is legal on v7x as well.
    cbytes = jnp.dtype(compute_dtype).itemsize
    hwc = H * W * C
    footprint = (
        4 * hwc * 4                          # x / out blocks, double-buffered, f32
        + 2 * 2 * 9 * C * C * cbytes         # two weights, double-buffered
        + 6 * (H + 2) * W * C * cbytes       # hp + w_m1 + w_p1 + merged (3C)
        + 3 * hwc * 4                        # acc / h / residual temporaries (f32)
    )
    vmem_limit = int(min(max(footprint * 2, 32 << 20), 64 << 20))

    kernel = functools.partial(resnet_block_kernel, compute_dtype=compute_dtype)
    out = pl.pallas_call(
        kernel,
        out_shape=jax.ShapeDtypeStruct((B, H, W, C), x.dtype),
        grid_spec=pltpu.PrefetchScalarGridSpec(
            num_scalar_prefetch=0,
            grid=(B,),
            in_specs=[
                pl.BlockSpec((pl.Squeezed(), H, W, C), lambda b: (b, 0, 0, 0)),
                # Constant-index weight blocks: Pallas keeps the resident copy
                # across grid steps (no per-step re-DMA).
                pl.BlockSpec((3, 3 * C, C), lambda b: (0, 0, 0)),
                pl.BlockSpec((3, 3 * C, C), lambda b: (0, 0, 0)),
            ],
            out_specs=pl.BlockSpec((pl.Squeezed(), H, W, C),
                                   lambda b: (b, 0, 0, 0)),
        ),
        compiler_params=pltpu.CompilerParams(
            dimension_semantics=("parallel",),
            vmem_limit_bytes=vmem_limit),
    )(x, w1m, w2m)

    return jnp.transpose(out, (0, 3, 1, 2))                 # NHWC -> NCHW


# ---------------- plain-JAX reference (full PyTorch semantics, incl. bias) ----
def _ref_resnet_block(x_nchw, w1, b1, w2, b2):
    x = jnp.transpose(x_nchw, (0, 2, 3, 1))  # NHWC
    w1t = jnp.transpose(w1, (2, 3, 1, 0))    # HWIO
    w2t = jnp.transpose(w2, (2, 3, 1, 0))

    def conv(t, w, b):
        t = jnp.pad(t, ((0, 0), (1, 1), (1, 1), (0, 0)), mode="reflect")
        y = jax.lax.conv_general_dilated(
            t, w, window_strides=(1, 1), padding="VALID",
            dimension_numbers=("NHWC", "HWIO", "NHWC"))
        return y + b.reshape(1, 1, 1, -1)

    def inorm(t):
        m = jnp.mean(t, axis=(1, 2), keepdims=True)
        v = jnp.mean((t - m) ** 2, axis=(1, 2), keepdims=True)
        return (t - m) * jax.lax.rsqrt(v + EPS)

    h = jnp.maximum(inorm(conv(x, w1t, b1)), 0.0)
    h = inorm(conv(h, w2t, b2))
    return jnp.transpose(x + h, (0, 3, 1, 2))


if __name__ == "__main__":
    B, C, H, W = 2, 4, 16, 16  # dim = 4

    key = jax.random.PRNGKey(0)
    kx, kw1, kb1, kw2, kb2 = jax.random.split(key, 5)
    x = jax.random.normal(kx, (B, C, H, W), dtype=jnp.float32)
    # Conv2d(dim, dim, 3) shaped synthetic weights.
    w1 = jax.random.normal(kw1, (C, C, 3, 3), dtype=jnp.float32) * 0.1
    b1 = jax.random.normal(kb1, (C,), dtype=jnp.float32) * 0.1
    w2 = jax.random.normal(kw2, (C, C, 3, 3), dtype=jnp.float32) * 0.1
    b2 = jax.random.normal(kb2, (C,), dtype=jnp.float32) * 0.1

    ref = jax.block_until_ready(_ref_resnet_block(x, w1, b1, w2, b2))

    # f32 operand path: bit-for-bit semantics of the PyTorch block (bias folded
    # away exactly by the affine-free instance norm).
    out_f32 = jax.block_until_ready(
        resnet_block(x, w1, b1, w2, b2, compute_dtype=jnp.float32))
    assert out_f32.shape == (B, C, H, W)
    assert jnp.allclose(out_f32, ref, atol=5e-4, rtol=5e-4), "f32 mismatch vs reference"

    # Default bf16-MXU path (recommended on v5e/v6e/v7x): layout + statistics
    # stay f32, only matmul operands are bf16 -> loose tolerance check.
    out_bf16 = jax.block_until_ready(resnet_block(x, w1, b1, w2, b2))
    assert out_bf16.shape == (B, C, H, W)
    assert bool(jnp.all(jnp.isfinite(out_bf16)))
    assert float(jnp.max(jnp.abs(out_bf16 - ref))) < 0.5, "bf16 path diverged"

    print("KERNEL_OK")
</pallas_src>

<mosaic_0001>
module attributes {stable_mosaic.version = 11 : i64} {
  func.func @resnet_block_kernel(%arg0: i32, %arg1: memref<1x16x16x4xf32, #tpu.memory_space<vmem>>, %arg2: memref<3x12x4xf32, #tpu.memory_space<vmem>>, %arg3: memref<3x12x4xf32, #tpu.memory_space<vmem>>, %arg4: memref<1x16x16x4xf32, #tpu.memory_space<vmem>>) attributes {dimension_semantics = [#tpu.dimension_semantics<parallel>], iteration_bounds = array<i64: 2>, scalar_prefetch = 0 : i64, scratch_operands = 0 : i64, tpu.core_type = #tpu.core_type<tc>, window_params = [{transform_indices = @transform_0, window_bounds = array<i64: 1, 16, 16, 4>}, {pipeline_mode = #tpu.pipeline_mode<synchronous>, transform_indices = @transform_1, window_bounds = array<i64: 3, 12, 4>}, {pipeline_mode = #tpu.pipeline_mode<synchronous>, transform_indices = @transform_2, window_bounds = array<i64: 3, 12, 4>}, {transform_indices = @transform_3, window_bounds = array<i64: 1, 16, 16, 4>}]} {
    %c0 = arith.constant 0 : index
    %c0_0 = arith.constant 0 : index
    %c0_1 = arith.constant 0 : index
    %c0_2 = arith.constant 0 : index
    %0 = vector.load %arg1[%c0, %c0_0, %c0_1, %c0_2] : memref<1x16x16x4xf32, #tpu.memory_space<vmem>>, vector<1x16x16x4xf32>
    %1 = vector.shape_cast %0 : vector<1x16x16x4xf32> to vector<16x16x4xf32>
    %2 = vector.extract_strided_slice %1 {offsets = [1, 0, 0], sizes = [1, 16, 4], strides = [1, 1, 1]} : vector<16x16x4xf32> to vector<1x16x4xf32>
    %3 = vector.extract_strided_slice %1 {offsets = [14, 0, 0], sizes = [1, 16, 4], strides = [1, 1, 1]} : vector<16x16x4xf32> to vector<1x16x4xf32>
    %4 = tpu.concatenate %2, %1, %3 in 0 : vector<1x16x4xf32>, vector<16x16x4xf32>, vector<1x16x4xf32> -> vector<18x16x4xf32>
    %5 = vector.extract_strided_slice %4 {offsets = [0, 1, 0], sizes = [18, 1, 4], strides = [1, 1, 1]} : vector<18x16x4xf32> to vector<18x1x4xf32>
    %6 = vector.extract_strided_slice %4 {offsets = [0, 0, 0], sizes = [18, 15, 4], strides = [1, 1, 1]} : vector<18x16x4xf32> to vector<18x15x4xf32>
    %7 = tpu.concatenate %5, %6 in 1 : vector<18x1x4xf32>, vector<18x15x4xf32> -> vector<18x16x4xf32>
    %8 = vector.extract_strided_slice %4 {offsets = [0, 1, 0], sizes = [18, 15, 4], strides = [1, 1, 1]} : vector<18x16x4xf32> to vector<18x15x4xf32>
    %9 = vector.extract_strided_slice %4 {offsets = [0, 14, 0], sizes = [18, 1, 4], strides = [1, 1, 1]} : vector<18x16x4xf32> to vector<18x1x4xf32>
    %10 = tpu.concatenate %8, %9 in 1 : vector<18x15x4xf32>, vector<18x1x4xf32> -> vector<18x16x4xf32>
    %11 = tpu.concatenate %7, %4, %10 in 2 : vector<18x16x4xf32>, vector<18x16x4xf32>, vector<18x16x4xf32> -> vector<18x16x12xf32>
    %12 = vector.extract_strided_slice %11 {offsets = [0, 0, 0], sizes = [16, 16, 12], strides = [1, 1, 1]} : vector<18x16x12xf32> to vector<16x16x12xf32>
    %c0_3 = arith.constant 0 : index
    %c0_4 = arith.constant 0 : index
    %c0_5 = arith.constant 0 : index
    %13 = vector.load %arg2[%c0_3, %c0_4, %c0_5] : memref<3x12x4xf32, #tpu.memory_space<vmem>>, vector<1x12x4xf32>
    %14 = vector.shape_cast %13 : vector<1x12x4xf32> to vector<12x4xf32>
    "tpu.trace_start"() <{level = 10 : i32, message = "hwk,ko->hwo"}> : () -> ()
    %cst = arith.constant dense<0.000000e+00> : vector<16x16x4xf32>
    %15 = tpu.matmul %12, %14, %cst {dimension_numbers = #tpu.dot_dimension_numbers<[2], [0], [0, 1], [1], [0, 0, 0, 1, 1, 1], [], []>} : vector<16x16x12xf32>, vector<12x4xf32>, vector<16x16x4xf32> -> vector<16x16x4xf32>
    "tpu.trace_stop"() : () -> ()
    %16 = vector.extract_strided_slice %11 {offsets = [1, 0, 0], sizes = [16, 16, 12], strides = [1, 1, 1]} : vector<18x16x12xf32> to vector<16x16x12xf32>
    %c1 = arith.constant 1 : index
    %c0_6 = arith.constant 0 : index
    %c0_7 = arith.constant 0 : index
    %17 = vector.load %arg2[%c1, %c0_6, %c0_7] : memref<3x12x4xf32, #tpu.memory_space<vmem>>, vector<1x12x4xf32>
    %18 = vector.shape_cast %17 : vector<1x12x4xf32> to vector<12x4xf32>
    "tpu.trace_start"() <{level = 10 : i32, message = "hwk,ko->hwo"}> : () -> ()
    %cst_8 = arith.constant dense<0.000000e+00> : vector<16x16x4xf32>
    %19 = tpu.matmul %16, %18, %cst_8 {dimension_numbers = #tpu.dot_dimension_numbers<[2], [0], [0, 1], [1], [0, 0, 0, 1, 1, 1], [], []>} : vector<16x16x12xf32>, vector<12x4xf32>, vector<16x16x4xf32> -> vector<16x16x4xf32>
    "tpu.trace_stop"() : () -> ()
    %20 = arith.addf %15, %19 : vector<16x16x4xf32>
    %21 = vector.extract_strided_slice %11 {offsets = [2, 0, 0], sizes = [16, 16, 12], strides = [1, 1, 1]} : vector<18x16x12xf32> to vector<16x16x12xf32>
    %c2 = arith.constant 2 : index
    %c0_9 = arith.constant 0 : index
    %c0_10 = arith.constant 0 : index
    %22 = vector.load %arg2[%c2, %c0_9, %c0_10] : memref<3x12x4xf32, #tpu.memory_space<vmem>>, vector<1x12x4xf32>
    %23 = vector.shape_cast %22 : vector<1x12x4xf32> to vector<12x4xf32>
    "tpu.trace_start"() <{level = 10 : i32, message = "hwk,ko->hwo"}> : () -> ()
    %cst_11 = arith.constant dense<0.000000e+00> : vector<16x16x4xf32>
    %24 = tpu.matmul %21, %23, %cst_11 {dimension_numbers = #tpu.dot_dimension_numbers<[2], [0], [0, 1], [1], [0, 0, 0, 1, 1, 1], [], []>} : vector<16x16x12xf32>, vector<12x4xf32>, vector<16x16x4xf32> -> vector<16x16x4xf32>
    "tpu.trace_stop"() : () -> ()
    %25 = arith.addf %20, %24 : vector<16x16x4xf32>
    %cst_12 = arith.constant dense<0.000000e+00> : vector<4xf32>
    %26 = vector.multi_reduction <add>, %25, %cst_12 [0, 1] : vector<16x16x4xf32> to vector<4xf32>
    %27 = vector.shape_cast %26 : vector<4xf32> to vector<1x1x4xf32>
    %cst_13 = arith.constant 3.906250e-03 : f32
    %28 = vector.broadcast %cst_13 : f32 to vector<1x1x4xf32>
    %29 = arith.mulf %27, %28 : vector<1x1x4xf32>
    %30 = vector.broadcast %29 : vector<1x1x4xf32> to vector<16x16x4xf32>
    %31 = arith.subf %25, %30 : vector<16x16x4xf32>
    %32 = arith.mulf %31, %31 : vector<16x16x4xf32>
    %cst_14 = arith.constant dense<0.000000e+00> : vector<4xf32>
    %33 = vector.multi_reduction <add>, %32, %cst_14 [0, 1] : vector<16x16x4xf32> to vector<4xf32>
    %34 = vector.shape_cast %33 : vector<4xf32> to vector<1x1x4xf32>
    %cst_15 = arith.constant 3.906250e-03 : f32
    %35 = vector.broadcast %cst_15 : f32 to vector<1x1x4xf32>
    %36 = arith.mulf %34, %35 : vector<1x1x4xf32>
    %cst_16 = arith.constant 9.99999974E-6 : f32
    %37 = vector.broadcast %cst_16 : f32 to vector<1x1x4xf32>
    %38 = arith.addf %36, %37 : vector<1x1x4xf32>
    %39 = math.rsqrt %38 : vector<1x1x4xf32>
    %40 = vector.broadcast %39 : vector<1x1x4xf32> to vector<16x16x4xf32>
    %41 = arith.mulf %31, %40 : vector<16x16x4xf32>
    %cst_17 = arith.constant 0.000000e+00 : f32
    %42 = vector.broadcast %cst_17 : f32 to vector<16x16x4xf32>
    %43 = arith.maximumf %41, %42 : vector<16x16x4xf32>
    %44 = vector.extract_strided_slice %43 {offsets = [1, 0, 0], sizes = [1, 16, 4], strides = [1, 1, 1]} : vector<16x16x4xf32> to vector<1x16x4xf32>
    %45 = vector.extract_strided_slice %43 {offsets = [14, 0, 0], sizes = [1, 16, 4], strides = [1, 1, 1]} : vector<16x16x4xf32> to vector<1x16x4xf32>
    %46 = tpu.concatenate %44, %43, %45 in 0 : vector<1x16x4xf32>, vector<16x16x4xf32>, vector<1x16x4xf32> -> vector<18x16x4xf32>
    %47 = vector.extract_strided_slice %46 {offsets = [0, 1, 0], sizes = [18, 1, 4], strides = [1, 1, 1]} : vector<18x16x4xf32> to vector<18x1x4xf32>
    %48 = vector.extract_strided_slice %46 {offsets = [0, 0, 0], sizes = [18, 15, 4], strides = [1, 1, 1]} : vector<18x16x4xf32> to vector<18x15x4xf32>
    %49 = tpu.concatenate %47, %48 in 1 : vector<18x1x4xf32>, vector<18x15x4xf32> -> vector<18x16x4xf32>
    %50 = vector.extract_strided_slice %46 {offsets = [0, 1, 0], sizes = [18, 15, 4], strides = [1, 1, 1]} : vector<18x16x4xf32> to vector<18x15x4xf32>
    %51 = vector.extract_strided_slice %46 {offsets = [0, 14, 0], sizes = [18, 1, 4], strides = [1, 1, 1]} : vector<18x16x4xf32> to vector<18x1x4xf32>
    %52 = tpu.concatenate %50, %51 in 1 : vector<18x15x4xf32>, vector<18x1x4xf32> -> vector<18x16x4xf32>
    %53 = tpu.concatenate %49, %46, %52 in 2 : vector<18x16x4xf32>, vector<18x16x4xf32>, vector<18x16x4xf32> -> vector<18x16x12xf32>
    %54 = vector.extract_strided_slice %53 {offsets = [0, 0, 0], sizes = [16, 16, 12], strides = [1, 1, 1]} : vector<18x16x12xf32> to vector<16x16x12xf32>
    %c0_18 = arith.constant 0 : index
    %c0_19 = arith.constant 0 : index
    %c0_20 = arith.constant 0 : index
    %55 = vector.load %arg3[%c0_18, %c0_19, %c0_20] : memref<3x12x4xf32, #tpu.memory_space<vmem>>, vector<1x12x4xf32>
    %56 = vector.shape_cast %55 : vector<1x12x4xf32> to vector<12x4xf32>
    "tpu.trace_start"() <{level = 10 : i32, message = "hwk,ko->hwo"}> : () -> ()
    %cst_21 = arith.constant dense<0.000000e+00> : vector<16x16x4xf32>
    %57 = tpu.matmul %54, %56, %cst_21 {dimension_numbers = #tpu.dot_dimension_numbers<[2], [0], [0, 1], [1], [0, 0, 0, 1, 1, 1], [], []>} : vector<16x16x12xf32>, vector<12x4xf32>, vector<16x16x4xf32> -> vector<16x16x4xf32>
    "tpu.trace_stop"() : () -> ()
    %58 = vector.extract_strided_slice %53 {offsets = [1, 0, 0], sizes = [16, 16, 12], strides = [1, 1, 1]} : vector<18x16x12xf32> to vector<16x16x12xf32>
    %c1_22 = arith.constant 1 : index
    %c0_23 = arith.constant 0 : index
    %c0_24 = arith.constant 0 : index
    %59 = vector.load %arg3[%c1_22, %c0_23, %c0_24] : memref<3x12x4xf32, #tpu.memory_space<vmem>>, vector<1x12x4xf32>
    %60 = vector.shape_cast %59 : vector<1x12x4xf32> to vector<12x4xf32>
    "tpu.trace_start"() <{level = 10 : i32, message = "hwk,ko->hwo"}> : () -> ()
    %cst_25 = arith.constant dense<0.000000e+00> : vector<16x16x4xf32>
    %61 = tpu.matmul %58, %60, %cst_25 {dimension_numbers = #tpu.dot_dimension_numbers<[2], [0], [0, 1], [1], [0, 0, 0, 1, 1, 1], [], []>} : vector<16x16x12xf32>, vector<12x4xf32>, vector<16x16x4xf32> -> vector<16x16x4xf32>
    "tpu.trace_stop"() : () -> ()
    %62 = arith.addf %57, %61 : vector<16x16x4xf32>
    %63 = vector.extract_strided_slice %53 {offsets = [2, 0, 0], sizes = [16, 16, 12], strides = [1, 1, 1]} : vector<18x16x12xf32> to vector<16x16x12xf32>
    %c2_26 = arith.constant 2 : index
    %c0_27 = arith.constant 0 : index
    %c0_28 = arith.constant 0 : index
    %64 = vector.load %arg3[%c2_26, %c0_27, %c0_28] : memref<3x12x4xf32, #tpu.memory_space<vmem>>, vector<1x12x4xf32>
    %65 = vector.shape_cast %64 : vector<1x12x4xf32> to vector<12x4xf32>
    "tpu.trace_start"() <{level = 10 : i32, message = "hwk,ko->hwo"}> : () -> ()
    %cst_29 = arith.constant dense<0.000000e+00> : vector<16x16x4xf32>
    %66 = tpu.matmul %63, %65, %cst_29 {dimension_numbers = #tpu.dot_dimension_numbers<[2], [0], [0, 1], [1], [0, 0, 0, 1, 1, 1], [], []>} : vector<16x16x12xf32>, vector<12x4xf32>, vector<16x16x4xf32> -> vector<16x16x4xf32>
    "tpu.trace_stop"() : () -> ()
    %67 = arith.addf %62, %66 : vector<16x16x4xf32>
    %cst_30 = arith.constant dense<0.000000e+00> : vector<4xf32>
    %68 = vector.multi_reduction <add>, %67, %cst_30 [0, 1] : vector<16x16x4xf32> to vector<4xf32>
    %69 = vector.shape_cast %68 : vector<4xf32> to vector<1x1x4xf32>
    %cst_31 = arith.constant 3.906250e-03 : f32
    %70 = vector.broadcast %cst_31 : f32 to vector<1x1x4xf32>
    %71 = arith.mulf %69, %70 : vector<1x1x4xf32>
    %72 = vector.broadcast %71 : vector<1x1x4xf32> to vector<16x16x4xf32>
    %73 = arith.subf %67, %72 : vector<16x16x4xf32>
    %74 = arith.mulf %73, %73 : vector<16x16x4xf32>
    %cst_32 = arith.constant dense<0.000000e+00> : vector<4xf32>
    %75 = vector.multi_reduction <add>, %74, %cst_32 [0, 1] : vector<16x16x4xf32> to vector<4xf32>
    %76 = vector.shape_cast %75 : vector<4xf32> to vector<1x1x4xf32>
    %cst_33 = arith.constant 3.906250e-03 : f32
    %77 = vector.broadcast %cst_33 : f32 to vector<1x1x4xf32>
    %78 = arith.mulf %76, %77 : vector<1x1x4xf32>
    %cst_34 = arith.constant 9.99999974E-6 : f32
    %79 = vector.broadcast %cst_34 : f32 to vector<1x1x4xf32>
    %80 = arith.addf %78, %79 : vector<1x1x4xf32>
    %81 = math.rsqrt %80 : vector<1x1x4xf32>
    %82 = vector.broadcast %81 : vector<1x1x4xf32> to vector<16x16x4xf32>
    %83 = arith.mulf %73, %82 : vector<16x16x4xf32>
    %c0_35 = arith.constant 0 : index
    %c0_36 = arith.constant 0 : index
    %c0_37 = arith.constant 0 : index
    %c0_38 = arith.constant 0 : index
    %84 = vector.load %arg1[%c0_35, %c0_36, %c0_37, %c0_38] : memref<1x16x16x4xf32, #tpu.memory_space<vmem>>, vector<1x16x16x4xf32>
    %85 = vector.shape_cast %84 : vector<1x16x16x4xf32> to vector<16x16x4xf32>
    %86 = arith.addf %85, %83 : vector<16x16x4xf32>
    %c0_39 = arith.constant 0 : index
    %c0_40 = arith.constant 0 : index
    %c0_41 = arith.constant 0 : index
    %c0_42 = arith.constant 0 : index
    %87 = vector.load %arg4[%c0_39, %c0_40, %c0_41, %c0_42] : memref<1x16x16x4xf32, #tpu.memory_space<vmem>>, vector<1x16x16x4xf32>
    %88 = vector.shape_cast %87 : vector<1x16x16x4xf32> to vector<16x16x4xf32>
    %89 = vector.shape_cast %86 : vector<16x16x4xf32> to vector<1x16x16x4xf32>
    tpu.vector_store %arg4[%c0_39, %c0_40, %c0_41, %c0_42], %89 {strides = array<i32>} : memref<1x16x16x4xf32, #tpu.memory_space<vmem>>, vector<1x16x16x4xf32>,
    return
  }
  func.func @transform_0(%arg0: i32) -> (i32, i32, i32, i32) {
    %c0_i32 = arith.constant 0 : i32
    %c0_i32_0 = arith.constant 0 : i32
    %c0_i32_1 = arith.constant 0 : i32
    %c0_i32_2 = arith.constant 0 : i32
    return %arg0, %c0_i32, %c0_i32_0, %c0_i32_1 : i32, i32, i32, i32
  }
  func.func @transform_1(%arg0: i32) -> (i32, i32, i32) {
    %c0_i32 = arith.constant 0 : i32
    %c0_i32_0 = arith.constant 0 : i32
    %c0_i32_1 = arith.constant 0 : i32
    %c0_i32_2 = arith.constant 0 : i32
    return %c0_i32, %c0_i32_0, %c0_i32_1 : i32, i32, i32
  }
  func.func @transform_2(%arg0: i32) -> (i32, i32, i32) {
    %c0_i32 = arith.constant 0 : i32
    %c0_i32_0 = arith.constant 0 : i32
    %c0_i32_1 = arith.constant 0 : i32
    %c0_i32_2 = arith.constant 0 : i32
    return %c0_i32, %c0_i32_0, %c0_i32_1 : i32, i32, i32
  }
  func.func @transform_3(%arg0: i32) -> (i32, i32, i32, i32) {
    %c0_i32 = arith.constant 0 : i32
    %c0_i32_0 = arith.constant 0 : i32
    %c0_i32_1 = arith.constant 0 : i32
    %c0_i32_2 = arith.constant 0 : i32
    return %arg0, %c0_i32, %c0_i32_0, %c0_i32_1 : i32, i32, i32, i32
  }
}

</mosaic_0001>

<llo_original>
// kernel: tpu_custom_call.1
$region0: #{tpu_custom_call.1}
  #allocation0 [shape = 'u32[]', space=smem, size = 0x4, offset = 0x4, fixed_abs, tag = 'smem constant byte address 0x4 - core index']
  #allocation1 [shape = 'u32[72,128]{1,0:T(1,128)}', space=vmem, size = 0x9000, scoped, tag = 'internal scratch']
  %s0 = inlined_call_operand.vmem [shape: f32[2,16,16,4], index: 0, kind: input, shape index: {}]
  %s1 = inlined_call_operand.vmem [shape: f32[3,12,4], index: 1, kind: input, shape index: {}]
  %s2 = inlined_call_operand.vmem [shape: f32[3,12,4], index: 2, kind: input, shape index: {}]
  %s3 = inlined_call_operand.vmem [shape: f32[2,16,16,4], index: 3, kind: output, shape index: {}]
  %s4 = sld [smem:[#allocation0]]
  $region45: #{tpu_custom_call.1} parent=0
    _
  %s6 = ssub.s32 1, %s4
  %s7 = scalar_select 0, %s6, %s4
  loop: start=0, step=1, limit=4
  $region2: #{tpu_custom_call.1} parent=0 // loop_pre_header
    _
  $region3: #{tpu_custom_call.1} parent=0 // loop_header
    %s9 = sphi 0, %s13
    %p10 = scmp.ge.s32.totalorder %s9, 4
    %s19 = sphi 0, %s21
    %s22 = sphi 0, %s19
    %s23 = sphi 0, %s22
    %s39 = sphi 0, %s23
    %s43 = sphi 0, %s43
    %s45 = sphi 0, %s43
    %s46 = sphi 0, %s45
    %s60 = sphi 0, %s46
    %s64 = sphi 0, %s64
    %s66 = sphi 0, %s64
    %s67 = sphi 0, %s66
    %s81 = sphi 0, %s67
    %s87 = sphi 0, %s89
    %s90 = sphi 0, %s87
    %s91 = sphi 0, %s90
    %s107 = sphi 0, %s91
  $region4: #{tpu_custom_call.1} parent=0 // loop_header_branch
    %12 = sbr.rel (%p10) target = $region8
  $region5: #{tpu_custom_call.1} parent=0 // loop_body
    %s14 = ssub.s32 %s9, 1
    %s15 = ssub.s32 %s9, 2
    %s16 = sadd.s32 %s9, 1
    %s17 = ssub.s32 %s9, %s16
    %p18 = scmp.eq.s32.totalorder %s17, 0
    %s20 = sadd.s32 %s19, 1
    %s21 = scalar_select %p18, %s19, %s20
    %p24 = pneg %p18
    %p25 = scmp.eq.s32.totalorder %s9, 1
    %p26 = por %p24, %p25
    %p27 = scmp.ne.s32.totalorder %s19, %s22
    %p28 = scmp.eq.s32.totalorder %s9, 0
    %p29 = por %p27, %p28
    %p30 = scmp.ne.s32.totalorder %s19, %s22
    %p31 = scmp.eq.s32.totalorder %s14, 1
    %p32 = por %p30, %p31
    %p33 = scmp.ne.s32.totalorder %s22, %s23
    %p34 = scmp.eq.s32.totalorder %s14, 0
    %p35 = por %p33, %p34
    %p36 = scmp.ne.s32.totalorder %s22, %s23
    %p37 = scmp.eq.s32.totalorder %s15, 1
    %p38 = por %p36, %p37
    %p40 = scmp.ne.s32.totalorder %s23, %s39
    %p41 = scmp.eq.s32.totalorder %s15, 0
    %p42 = por %p40, %p41
    %s44 = sadd.s32 %s43, 1
    %p47 = scmp.eq.s32.totalorder %s9, 1
    %p48 = scmp.ne.s32.totalorder %s43, %s45
    %p49 = scmp.eq.s32.totalorder %s9, 0
    %p50 = por %p48, %p49
    %p51 = scmp.ne.s32.totalorder %s43, %s45
    %p52 = scmp.eq.s32.totalorder %s14, 1
    %p53 = por %p51, %p52
    %p54 = scmp.ne.s32.totalorder %s45, %s46
    %p55 = scmp.eq.s32.totalorder %s14, 0
    %p56 = por %p54, %p55
    %p57 = scmp.ne.s32.totalorder %s45, %s46
    %p58 = scmp.eq.s32.totalorder %s15, 1
    %p59 = por %p57, %p58
    %p61 = scmp.ne.s32.totalorder %s46, %s60
    %p62 = scmp.eq.s32.totalorder %s15, 0
    %p63 = por %p61, %p62
    %s65 = sadd.s32 %s64, 1
    %p68 = scmp.eq.s32.totalorder %s9, 1
    %p69 = scmp.ne.s32.totalorder %s64, %s66
    %p70 = scmp.eq.s32.totalorder %s9, 0
    %p71 = por %p69, %p70
    %p72 = scmp.ne.s32.totalorder %s64, %s66
    %p73 = scmp.eq.s32.totalorder %s14, 1
    %p74 = por %p72, %p73
    %p75 = scmp.ne.s32.totalorder %s66, %s67
    %p76 = scmp.eq.s32.totalorder %s14, 0
    %p77 = por %p75, %p76
    %p78 = scmp.ne.s32.totalorder %s66, %s67
    %p79 = scmp.eq.s32.totalorder %s15, 1
    %p80 = por %p78, %p79
    %p82 = scmp.ne.s32.totalorder %s67, %s81
    %p83 = scmp.eq.s32.totalorder %s15, 0
    %p84 = por %p82, %p83
    %s85 = ssub.s32 %s9, %s16
    %p86 = scmp.eq.s32.totalorder %s85, 0
    %s88 = sadd.s32 %s87, 1
    %s89 = scalar_select %p86, %s87, %s88
    %p92 = pneg %p86
    %p93 = scmp.eq.s32.totalorder %s9, 1
    %p94 = por %p92, %p93
    %p95 = scmp.ne.s32.totalorder %s87, %s90
    %p96 = scmp.eq.s32.totalorder %s9, 0
    %p97 = por %p95, %p96
    %p98 = scmp.ne.s32.totalorder %s87, %s90
    %p99 = scmp.eq.s32.totalorder %s14, 1
    %p100 = por %p98, %p99
    %p101 = scmp.ne.s32.totalorder %s90, %s91
    %p102 = scmp.eq.s32.totalorder %s14, 0
    %p103 = por %p101, %p102
    %p104 = scmp.ne.s32.totalorder %s90, %s91
    %p105 = scmp.eq.s32.totalorder %s15, 1
    %p106 = por %p104, %p105
    %p108 = scmp.ne.s32.totalorder %s91, %s107
    %p109 = scmp.eq.s32.totalorder %s15, 0
    %p110 = por %p108, %p109
    %p111 = scmp.le.s32.totalorder 1, %s9
    %p112 = scmp.lt.s32.totalorder %s9, 3
    %p113 = pnand %p111, %p112
    %p114 = pneg %p113
    // Predicated region
    $region9: #{tpu_custom_call.1} parent=5 // pred_check
      _
    $region10: #{tpu_custom_call.1} parent=5 // pred_check_branch
      %116 = sbr.rel (%p113) target = $region12
    $region11: #{tpu_custom_call.1} parent=5 // pred_region
      %s117 = ssub.s32 %s9, 1
      // Predicated region
      $region13: #{tpu_custom_call.1} parent=11 // pred_check
        %p118 = pneg %p56
      $region14: #{tpu_custom_call.1} parent=11 // pred_check_branch
        %120 = sbr.rel (%p118) target = $region16
      $region15: #{tpu_custom_call.1} parent=11 // pred_region
        _
      $region16: #{tpu_custom_call.1} parent=11 // pred_fallthru
        _
      // Predicated region
      $region17: #{tpu_custom_call.1} parent=11 // pred_check
        %p121 = pneg %p77
      $region18: #{tpu_custom_call.1} parent=11 // pred_check_branch
        %123 = sbr.rel (%p121) target = $region20
      $region19: #{tpu_custom_call.1} parent=11 // pred_region
        _
      $region20: #{tpu_custom_call.1} parent=11 // pred_fallthru
        _
    $region12: #{tpu_custom_call.1} parent=5 // pred_fallthru
      _
    %p124 = scmp.lt.s32.totalorder %s9, 2
    // Predicated region
    $region21: #{tpu_custom_call.1} parent=5 // pred_check
      %p125 = pneg %p124
    $region22: #{tpu_custom_call.1} parent=5 // pred_check_branch
      %127 = sbr.rel (%p125) target = $region24
    $region23: #{tpu_custom_call.1} parent=5 // pred_region
      // Predicated region
      $region25: #{tpu_custom_call.1} parent=23 // pred_check
        %p128 = pneg %p29
      $region26: #{tpu_custom_call.1} parent=23 // pred_check_branch
        %130 = sbr.rel (%p128) target = $region28
      $region27: #{tpu_custom_call.1} parent=23 // pred_region
        %p131 = scmp.lt.s32.totalorder %s9, 1
        %s132 = scalar_select %p131, %s9, 1
        %s133 = smul.addr %s132, 32
        %s134 = smul.addr %s133, 8
        %s135 = scalar_lea.vmem %s0, %s134
      $region28: #{tpu_custom_call.1} parent=23 // pred_fallthru
        _
    $region24: #{tpu_custom_call.1} parent=5 // pred_fallthru
      _
    %p136 = scmp.le.s32.totalorder 1, %s9
    %p137 = scmp.lt.s32.totalorder %s9, 3
    %p138 = pnand %p136, %p137
    %p139 = pneg %p138
    // Predicated region
    $region29: #{tpu_custom_call.1} parent=5 // pred_check
      _
    $region30: #{tpu_custom_call.1} parent=5 // pred_check_branch
      %141 = sbr.rel (%p138) target = $region32
    $region31: #{tpu_custom_call.1} parent=5 // pred_region
      %s142 = ssub.s32 %s9, 1
      %p143 = scmp.lt.s32.totalorder %s14, 1
      %s144 = scalar_select %p143, %s14, 1
      %s145 = smul.addr %s144, 32
      %s146 = smul.addr %s145, 8
      %s147 = scalar_lea.vmem %s0, %s146
      %p148 = pneg %p35
      %p149 = pneg %p32
      %p150 = pneg %p56
      %p151 = pneg %p53
      %p152 = pneg %p77
      %p153 = pneg %p74
      %p154 = pneg %p103
      %p155 = pneg %p100
      %p156 = scmp.lt.s32.totalorder %s14, 1
      %s157 = scalar_select %p156, %s14, 1
      %s158 = smul.addr %s157, 32
      %s159 = smul.addr %s158, 8
      %s160 = scalar_lea.vmem %s3, %s159
      %p161 = scmp.lt.s32.totalorder %s14, 1
      %s162 = scalar_select %p161, %s14, 1
      %s163 = smul.addr %s162, 32
      %s164 = smul.addr %s163, 8
      %s165 = scalar_lea.vmem %s0, %s164
      %p166 = scmp.lt.s32.totalorder %s14, 1
      %s167 = scalar_select %p166, %s14, 1
      %s168 = smul.addr %s167, 32
      %s169 = smul.addr %s168, 8
      %s170 = scalar_lea.vmem %s3, %s169
      %v171 = vld [vmem:[%s165] sm:$0xff]
      %v172 = vld [vmem:[%s165 + $0x8] sm:$0xff]
      %v173 = vld [vmem:[%s165 + $0x10] sm:$0xff]
      %v174 = vld [vmem:[%s165 + $0x18] sm:$0xff]
      %v175 = vld [vmem:[%s165 + $0x20] sm:$0xff]
      %v176 = vld [vmem:[%s165 + $0x28] sm:$0xff]
      %v177 = vld [vmem:[%s165 + $0x30] sm:$0xff]
      %v178 = vld [vmem:[%s165 + $0x38] sm:$0xff]
      %v179 = vld [vmem:[%s165 + $0x40] sm:$0xff]
      %v180 = vld [vmem:[%s165 + $0x48] sm:$0xff]
      %v181 = vld [vmem:[%s165 + $0x50] sm:$0xff]
      %v182 = vld [vmem:[%s165 + $0x58] sm:$0xff]
      %v183 = vld [vmem:[%s165 + $0x60] sm:$0xff]
      %v184 = vld [vmem:[%s165 + $0x68] sm:$0xff]
      %v185 = vld [vmem:[%s165 + $0x70] sm:$0xff]
      %v186 = vld [vmem:[%s165 + $0x78] sm:$0xff]
      %v187 = vld [vmem:[%s165 + $0x80] sm:$0xff]
      %v188 = vld [vmem:[%s165 + $0x88] sm:$0xff]
      %v189 = vld [vmem:[%s165 + $0x90] sm:$0xff]
      %v190 = vld [vmem:[%s165 + $0x98] sm:$0xff]
      %v191 = vld [vmem:[%s165 + $0xa0] sm:$0xff]
      %v192 = vld [vmem:[%s165 + $0xa8] sm:$0xff]
      %v193 = vld [vmem:[%s165 + $0xb0] sm:$0xff]
      %v194 = vld [vmem:[%s165 + $0xb8] sm:$0xff]
      %v195 = vld [vmem:[%s165 + $0xc0] sm:$0xff]
      %v196 = vld [vmem:[%s165 + $0xc8] sm:$0xff]
      %v197 = vld [vmem:[%s165 + $0xd0] sm:$0xff]
      %v198 = vld [vmem:[%s165 + $0xd8] sm:$0xff]
      %v199 = vld [vmem:[%s165 + $0xe0] sm:$0xff]
      %v200 = vld [vmem:[%s165 + $0xe8] sm:$0xff]
      %v201 = vld [vmem:[%s165 + $0xf0] sm:$0xff]
      %v202 = vld [vmem:[%s165 + $0xf8] sm:$0xff]
      %v219 = vrot.slane %v173, 1
      %v220 = vrot.slane %v171, 1
      %v221 = vrot.slane %v175, 1
      %v222 = vrot.slane %v177, 1
      %v223 = vrot.slane %v179, 1
      %v224 = vrot.slane %v181, 1
      %v225 = vrot.slane %v183, 1
      %v226 = vrot.slane %v185, 1
      %v227 = vrot.slane %v187, 1
      %v228 = vrot.slane %v189, 1
      %v229 = vrot.slane %v191, 1
      %v230 = vrot.slane %v193, 1
      %v231 = vrot.slane %v195, 1
      %v232 = vrot.slane %v197, 1
      %v233 = vrot.slane %v199, 1
      %v234 = vrot.slane %v201, 1
      %vm267 = vcmask 1040384
      %v268 = vrot.slane %v173, 7
      %v269 = vrot.slane %v174, 7
      %v270 = vsel %vm267, %v268, %v269
      %v271 = vrot.slane %v171, 7
      %v272 = vrot.slane %v172, 7
      %v273 = vsel %vm267, %v271, %v272
      %v274 = vrot.slane %v175, 7
      %v275 = vrot.slane %v176, 7
      %v276 = vsel %vm267, %v274, %v275
      %v277 = vrot.slane %v177, 7
      %v278 = vrot.slane %v178, 7
      %v279 = vsel %vm267, %v277, %v278
      %v280 = vrot.slane %v179, 7
      %v281 = vrot.slane %v180, 7
      %v282 = vsel %vm267, %v280, %v281
      %v283 = vrot.slane %v181, 7
      %v284 = vrot.slane %v182, 7
      %v285 = vsel %vm267, %v283, %v284
      %v286 = vrot.slane %v183, 7
      %v287 = vrot.slane %v184, 7
      %v288 = vsel %vm267, %v286, %v287
      %v289 = vrot.slane %v185, 7
      %v290 = vrot.slane %v186, 7
      %v291 = vsel %vm267, %v289, %v290
      %v292 = vrot.slane %v187, 7
      %v293 = vrot.slane %v188, 7
      %v294 = vsel %vm267, %v292, %v293
      %v295 = vrot.slane %v189, 7
      %v296 = vrot.slane %v190, 7
      %v297 = vsel %vm267, %v295, %v296
      %v298 = vrot.slane %v191, 7
      %v299 = vrot.slane %v192, 7
      %v300 = vsel %vm267, %v298, %v299
      %v301 = vrot.slane %v193, 7
      %v302 = vrot.slane %v194, 7
      %v303 = vsel %vm267, %v301, %v302
      %v304 = vrot.slane %v195, 7
      %v305 = vrot.slane %v196, 7
      %v306 = vsel %vm267, %v304, %v305
      %v307 = vrot.slane %v197, 7
      %v308 = vrot.slane %v198, 7
      %v309 = vsel %vm267, %v307, %v308
      %v310 = vrot.slane %v199, 7
      %v311 = vrot.slane %v200, 7
      %v312 = vsel %vm267, %v310, %v311
      %v313 = vrot.slane %v201, 7
      %v314 = vrot.slane %v202, 7
      %v315 = vsel %vm267, %v313, %v314
      %v348 = vsel %vm267, %v219, %v268
      %v349 = vsel %vm267, %v220, %v271
      %v350 = vsel %vm267, %v221, %v274
      %v351 = vsel %vm267, %v222, %v277
      %v352 = vsel %vm267, %v223, %v280
      %v353 = vsel %vm267, %v224, %v283
      %v354 = vsel %vm267, %v225, %v286
      %v355 = vsel %vm267, %v226, %v289
      %v356 = vsel %vm267, %v227, %v292
      %v357 = vsel %vm267, %v228, %v295
      %v358 = vsel %vm267, %v229, %v298
      %v359 = vsel %vm267, %v230, %v301
      %v360 = vsel %vm267, %v231, %v304
      %v361 = vsel %vm267, %v232, %v307
      %v362 = vsel %vm267, %v233, %v310
      %v363 = vsel %vm267, %v234, %v313
      %vm364 = vcmask 1046528
      %v365 = vrot.slane %v174, 1
      %v366 = vsel %vm364, %v219, %v365
      %v367 = vrot.slane %v172, 1
      %v368 = vsel %vm364, %v220, %v367
      %v369 = vrot.slane %v176, 1
      %v370 = vsel %vm364, %v221, %v369
      %v371 = vrot.slane %v178, 1
      %v372 = vsel %vm364, %v222, %v371
      %v373 = vrot.slane %v180, 1
      %v374 = vsel %vm364, %v223, %v373
      %v375 = vrot.slane %v182, 1
      %v376 = vsel %vm364, %v224, %v375
      %v377 = vrot.slane %v184, 1
      %v378 = vsel %vm364, %v225, %v377
      %v379 = vrot.slane %v186, 1
      %v380 = vsel %vm364, %v226, %v379
      %v381 = vrot.slane %v188, 1
      %v382 = vsel %vm364, %v227, %v381
      %v383 = vrot.slane %v190, 1
      %v384 = vsel %vm364, %v228, %v383
      %v385 = vrot.slane %v192, 1
      %v386 = vsel %vm364, %v229, %v385
      %v387 = vrot.slane %v194, 1
      %v388 = vsel %vm364, %v230, %v387
      %v389 = vrot.slane %v196, 1
      %v390 = vsel %vm364, %v231, %v389
      %v391 = vrot.slane %v198, 1
      %v392 = vsel %vm364, %v232, %v391
      %v393 = vrot.slane %v200, 1
      %v394 = vsel %vm364, %v233, %v393
      %v395 = vrot.slane %v202, 1
      %v396 = vsel %vm364, %v234, %v395
      %v429 = vsel %vm364, %v365, %v269
      %v430 = vsel %vm364, %v367, %v272
      %v431 = vsel %vm364, %v369, %v275
      %v432 = vsel %vm364, %v371, %v278
      %v433 = vsel %vm364, %v373, %v281
      %v434 = vsel %vm364, %v375, %v284
      %v435 = vsel %vm364, %v377, %v287
      %v436 = vsel %vm364, %v379, %v290
      %v437 = vsel %vm364, %v381, %v293
      %v438 = vsel %vm364, %v383, %v296
      %v439 = vsel %vm364, %v385, %v299
      %v440 = vsel %vm364, %v387, %v302
      %v441 = vsel %vm364, %v389, %v305
      %v442 = vsel %vm364, %v391, %v308
      %v443 = vsel %vm364, %v393, %v311
      %v444 = vsel %vm364, %v395, %v314
      %445 = vrot.lane.b32.xlu0 %v173, 4
      %v446 = vpop.permute.xlu0 %445
      %447 = vrot.lane.b32.xlu0 %v174, 4
      %v448 = vpop.permute.xlu0 %447
      %449 = vrot.lane.b32.xlu0 %v171, 4
      %v450 = vpop.permute.xlu0 %449
      %451 = vrot.lane.b32.xlu0 %v172, 4
      %v452 = vpop.permute.xlu0 %451
      %453 = vrot.lane.b32.xlu0 %v175, 4
      %v454 = vpop.permute.xlu0 %453
      %455 = vrot.lane.b32.xlu0 %v176, 4
      %v456 = vpop.permute.xlu0 %455
      %457 = vrot.lane.b32.xlu0 %v177, 4
      %v458 = vpop.permute.xlu0 %457
      %459 = vrot.lane.b32.xlu0 %v178, 4
      %v460 = vpop.permute.xlu0 %459
      %461 = vrot.lane.b32.xlu0 %v179, 4
      %v462 = vpop.permute.xlu0 %461
      %463 = vrot.lane.b32.xlu0 %v180, 4
      %v464 = vpop.permute.xlu0 %463
      %465 = vrot.lane.b32.xlu0 %v181, 4
      %v466 = vpop.permute.xlu0 %465
      %467 = vrot.lane.b32.xlu0 %v182, 4
      %v468 = vpop.permute.xlu0 %467
      %469 = vrot.lane.b32.xlu0 %v183, 4
      %v470 = vpop.permute.xlu0 %469
      %471 = vrot.lane.b32.xlu0 %v184, 4
      %v472 = vpop.permute.xlu0 %471
      %473 = vrot.lane.b32.xlu0 %v185, 4
      %v474 = vpop.permute.xlu0 %473
      %475 = vrot.lane.b32.xlu0 %v186, 4
      %v476 = vpop.permute.xlu0 %475
      %477 = vrot.lane.b32.xlu0 %v187, 4
      %v478 = vpop.permute.xlu0 %477
      %479 = vrot.lane.b32.xlu0 %v188, 4
      %v480 = vpop.permute.xlu0 %479
      %481 = vrot.lane.b32.xlu0 %v189, 4
      %v482 = vpop.permute.xlu0 %481
      %483 = vrot.lane.b32.xlu0 %v190, 4
      %v484 = vpop.permute.xlu0 %483
      %485 = vrot.lane.b32.xlu0 %v191, 4
      %v486 = vpop.permute.xlu0 %485
      %487 = vrot.lane.b32.xlu0 %v192, 4
      %v488 = vpop.permute.xlu0 %487
      %489 = vrot.lane.b32.xlu0 %v193, 4
      %v490 = vpop.permute.xlu0 %489
      %491 = vrot.lane.b32.xlu0 %v194, 4
      %v492 = vpop.permute.xlu0 %491
      %493 = vrot.lane.b32.xlu0 %v195, 4
      %v494 = vpop.permute.xlu0 %493
      %495 = vrot.lane.b32.xlu0 %v196, 4
      %v496 = vpop.permute.xlu0 %495
      %497 = vrot.lane.b32.xlu0 %v197, 4
      %v498 = vpop.permute.xlu0 %497
      %499 = vrot.lane.b32.xlu0 %v198, 4
      %v500 = vpop.permute.xlu0 %499
      %501 = vrot.lane.b32.xlu0 %v199, 4
      %v502 = vpop.permute.xlu0 %501
      %503 = vrot.lane.b32.xlu0 %v200, 4
      %v504 = vpop.permute.xlu0 %503
      %505 = vrot.lane.b32.xlu0 %v201, 4
      %v506 = vpop.permute.xlu0 %505
      %507 = vrot.lane.b32.xlu0 %v202, 4
      %v508 = vpop.permute.xlu0 %507
      %557 = vrot.lane.b32.xlu0 %v366, 8
      %v558 = vpop.permute.xlu0 %557
      %559 = vrot.lane.b32.xlu0 %v429, 8
      %v560 = vpop.permute.xlu0 %559
      %561 = vrot.lane.b32.xlu0 %v368, 8
      %v562 = vpop.permute.xlu0 %561
      %563 = vrot.lane.b32.xlu0 %v430, 8
      %v564 = vpop.permute.xlu0 %563
      %565 = vrot.lane.b32.xlu0 %v370, 8
      %v566 = vpop.permute.xlu0 %565
      %567 = vrot.lane.b32.xlu0 %v431, 8
      %v568 = vpop.permute.xlu0 %567
      %569 = vrot.lane.b32.xlu0 %v372, 8
      %v570 = vpop.permute.xlu0 %569
      %571 = vrot.lane.b32.xlu0 %v432, 8
      %v572 = vpop.permute.xlu0 %571
      %573 = vrot.lane.b32.xlu0 %v374, 8
      %v574 = vpop.permute.xlu0 %573
      %575 = vrot.lane.b32.xlu0 %v433, 8
      %v576 = vpop.permute.xlu0 %575
      %577 = vrot.lane.b32.xlu0 %v376, 8
      %v578 = vpop.permute.xlu0 %577
      %579 = vrot.lane.b32.xlu0 %v434, 8
      %v580 = vpop.permute.xlu0 %579
      %581 = vrot.lane.b32.xlu0 %v378, 8
      %v582 = vpop.permute.xlu0 %581
      %583 = vrot.lane.b32.xlu0 %v435, 8
      %v584 = vpop.permute.xlu0 %583
      %585 = vrot.lane.b32.xlu0 %v380, 8
      %v586 = vpop.permute.xlu0 %585
      %587 = vrot.lane.b32.xlu0 %v436, 8
      %v588 = vpop.permute.xlu0 %587
      %589 = vrot.lane.b32.xlu0 %v382, 8
      %v590 = vpop.permute.xlu0 %589
      %591 = vrot.lane.b32.xlu0 %v437, 8
      %v592 = vpop.permute.xlu0 %591
      %593 = vrot.lane.b32.xlu0 %v384, 8
      %v594 = vpop.permute.xlu0 %593
      %595 = vrot.lane.b32.xlu0 %v438, 8
      %v596 = vpop.permute.xlu0 %595
      %597 = vrot.lane.b32.xlu0 %v386, 8
      %v598 = vpop.permute.xlu0 %597
      %599 = vrot.lane.b32.xlu0 %v439, 8
      %v600 = vpop.permute.xlu0 %599
      %601 = vrot.lane.b32.xlu0 %v388, 8
      %v602 = vpop.permute.xlu0 %601
      %603 = vrot.lane.b32.xlu0 %v440, 8
      %v604 = vpop.permute.xlu0 %603
      %605 = vrot.lane.b32.xlu0 %v390, 8
      %v606 = vpop.permute.xlu0 %605
      %607 = vrot.lane.b32.xlu0 %v441, 8
      %v608 = vpop.permute.xlu0 %607
      %609 = vrot.lane.b32.xlu0 %v392, 8
      %v610 = vpop.permute.xlu0 %609
      %611 = vrot.lane.b32.xlu0 %v442, 8
      %v612 = vpop.permute.xlu0 %611
      %613 = vrot.lane.b32.xlu0 %v394, 8
      %v614 = vpop.permute.xlu0 %613
      %615 = vrot.lane.b32.xlu0 %v443, 8
      %v616 = vpop.permute.xlu0 %615
      %617 = vrot.lane.b32.xlu0 %v396, 8
      %v618 = vpop.permute.xlu0 %617
      %619 = vrot.lane.b32.xlu0 %v444, 8
      %v620 = vpop.permute.xlu0 %619
      %vm653 = vcmask 31744
      %v654 = vsel %vm653, %v348, %v446
      %v655 = vsel %vm653, %v270, %v448
      %v656 = vsel %vm653, %v349, %v450
      %v657 = vsel %vm653, %v273, %v452
      %v658 = vsel %vm653, %v350, %v454
      %v659 = vsel %vm653, %v276, %v456
      %v660 = vsel %vm653, %v351, %v458
      %v661 = vsel %vm653, %v279, %v460
      %v662 = vsel %vm653, %v352, %v462
      %v663 = vsel %vm653, %v282, %v464
      %v664 = vsel %vm653, %v353, %v466
      %v665 = vsel %vm653, %v285, %v468
      %v666 = vsel %vm653, %v354, %v470
      %v667 = vsel %vm653, %v288, %v472
      %v668 = vsel %vm653, %v355, %v474
      %v669 = vsel %vm653, %v291, %v476
      %v670 = vsel %vm653, %v356, %v478
      %v671 = vsel %vm653, %v294, %v480
      %v672 = vsel %vm653, %v357, %v482
      %v673 = vsel %vm653, %v297, %v484
      %v674 = vsel %vm653, %v358, %v486
      %v675 = vsel %vm653, %v300, %v488
      %v676 = vsel %vm653, %v359, %v490
      %v677 = vsel %vm653, %v303, %v492
      %v678 = vsel %vm653, %v360, %v494
      %v679 = vsel %vm653, %v306, %v496
      %v680 = vsel %vm653, %v361, %v498
      %v681 = vsel %vm653, %v309, %v500
      %v682 = vsel %vm653, %v362, %v502
      %v683 = vsel %vm653, %v312, %v504
      %v684 = vsel %vm653, %v363, %v506
      %v685 = vsel %vm653, %v315, %v508
      %vm686 = vcmask 64512
      %v687 = vsel %vm686, %v654, %v558
      %v688 = vsel %vm686, %v655, %v560
      %v689 = vsel %vm686, %v656, %v562
      %v690 = vsel %vm686, %v657, %v564
      %v691 = vsel %vm686, %v658, %v566
      %v692 = vsel %vm686, %v659, %v568
      %v693 = vsel %vm686, %v660, %v570
      %v694 = vsel %vm686, %v661, %v572
      %v695 = vsel %vm686, %v662, %v574
      %v696 = vsel %vm686, %v663, %v576
      %v697 = vsel %vm686, %v664, %v578
      %v698 = vsel %vm686, %v665, %v580
      %v699 = vsel %vm686, %v666, %v582
      %v700 = vsel %vm686, %v667, %v584
      %v701 = vsel %vm686, %v668, %v586
      %v702 = vsel %vm686, %v669, %v588
      %v703 = vsel %vm686, %v670, %v590
      %v704 = vsel %vm686, %v671, %v592
      %v705 = vsel %vm686, %v672, %v594
      %v706 = vsel %vm686, %v673, %v596
      %v707 = vsel %vm686, %v674, %v598
      %v708 = vsel %vm686, %v675, %v600
      %v709 = vsel %vm686, %v676, %v602
      %v710 = vsel %vm686, %v677, %v604
      %v711 = vsel %vm686, %v678, %v606
      %v712 = vsel %vm686, %v679, %v608
      %v713 = vsel %vm686, %v680, %v610
      %v714 = vsel %vm686, %v681, %v612
      %v715 = vsel %vm686, %v682, %v614
      %v716 = vsel %vm686, %v683, %v616
      %v717 = vsel %vm686, %v684, %v618
      %v718 = vsel %vm686, %v685, %v620
      %v719 = vld [vmem:[%s1] sm:$0xff]
      %v720 = vld [vmem:[%s1 + $0x8] sm:$0xf]
      %s721 = scalar_lea.vmem %s1, 16
      %v722 = vld [vmem:[%s721] sm:$0xff]
      %v723 = vld [vmem:[%s721 + $0x8] sm:$0xf]
      %vm724 = vcmask 97280
      %v726 = vsel %vm724, %v689, 0
      %v729 = vsel %vm724, %v690, 0
      %v732 = vsel %vm724, %v687, 0
      %v735 = vsel %vm724, %v688, 0
      %v738 = vsel %vm724, %v691, 0
      %v741 = vsel %vm724, %v692, 0
      %v744 = vsel %vm724, %v693, 0
      %v747 = vsel %vm724, %v694, 0
      %v750 = vsel %vm724, %v695, 0
      %v753 = vsel %vm724, %v696, 0
      %v756 = vsel %vm724, %v697, 0
      %v759 = vsel %vm724, %v698, 0
      %v762 = vsel %vm724, %v699, 0
      %v765 = vsel %vm724, %v700, 0
      %v768 = vsel %vm724, %v701, 0
      %v771 = vsel %vm724, %v702, 0
      %v774 = vsel %vm724, %v703, 0
      %v777 = vsel %vm724, %v704, 0
      %v780 = vsel %vm724, %v705, 0
      %v783 = vsel %vm724, %v706, 0
      %v786 = vsel %vm724, %v707, 0
      %v789 = vsel %vm724, %v708, 0
      %v792 = vsel %vm724, %v709, 0
      %v795 = vsel %vm724, %v710, 0
      %v798 = vsel %vm724, %v711, 0
      %v801 = vsel %vm724, %v712, 0
      %v804 = vsel %vm724, %v713, 0
      %v807 = vsel %vm724, %v714, 0
      %v810 = vsel %vm724, %v715, 0
      %v813 = vsel %vm724, %v716, 0
      %v816 = vsel %vm724, %v717, 0
      %v819 = vsel %vm724, %v718, 0
      %vm821 = vcmask 1043456
      %v823 = vsel %vm821, %v723, 0
      %825 = vmatpush.msra.mxu0 0.0
      %826 = vmatpush.msra.mxu0 0.0
      %827 = vmatpush.msra.mxu0 0.0
      %828 = vmatpush.msra.mxu0 0.0
      %829 = vmatpush.msra.mxu0 0.0
      %830 = vmatpush.msra.mxu0 0.0
      %831 = vmatpush.msra.mxu0 0.0
      %832 = vmatpush.msra.mxu0 0.0
      %833 = vmatpush.msra.mxu0 0.0
      %834 = vmatpush.msra.mxu0 0.0
      %835 = vmatpush.msra.mxu0 0.0
      %836 = vmatpush.msra.mxu0 0.0
      %837 = vmatpush.msra.mxu0 0.0
      %838 = vmatpush.msra.mxu0 0.0
      %839 = vmatpush.msra.mxu0 %v823
      %840 = vmatpush.msra.mxu0 %v722
      %841 = vmatmul.f32.gmra.mxu0 %v726
      %v842 = vpop.f32.mrf.mxu0
      %v843 = vadd.f32 0.0, %v842
      %844 = vmatmul.f32.gmra.mxu0 %v729
      %v845 = vpop.f32.mrf.mxu0
      %v846 = vadd.f32 0.0, %v845
      %847 = vmatmul.f32.gmra.mxu0 %v732
      %v848 = vpop.f32.mrf.mxu0
      %v849 = vadd.f32 0.0, %v848
      %850 = vmatmul.f32.gmra.mxu0 %v735
      %v851 = vpop.f32.mrf.mxu0
      %v852 = vadd.f32 0.0, %v851
      %853 = vmatmul.f32.gmra.mxu0 %v738
      %v854 = vpop.f32.mrf.mxu0
      %v855 = vadd.f32 0.0, %v854
      %856 = vmatmul.f32.gmra.mxu0 %v741
      %v857 = vpop.f32.mrf.mxu0
      %v858 = vadd.f32 0.0, %v857
      %859 = vmatmul.f32.gmra.mxu0 %v744
      %v860 = vpop.f32.mrf.mxu0
      %v861 = vadd.f32 0.0, %v860
      %862 = vmatmul.f32.gmra.mxu0 %v747
      %v863 = vpop.f32.mrf.mxu0
      %v864 = vadd.f32 0.0, %v863
      %865 = vmatmul.f32.gmra.mxu0 %v750
      %v866 = vpop.f32.mrf.mxu0
      %v867 = vadd.f32 0.0, %v866
      %868 = vmatmul.f32.gmra.mxu0 %v753
      %v869 = vpop.f32.mrf.mxu0
      %v870 = vadd.f32 0.0, %v869
      %871 = vmatmul.f32.gmra.mxu0 %v756
      %v872 = vpop.f32.mrf.mxu0
      %v873 = vadd.f32 0.0, %v872
      %874 = vmatmul.f32.gmra.mxu0 %v759
      %v875 = vpop.f32.mrf.mxu0
      %v876 = vadd.f32 0.0, %v875
      %877 = vmatmul.f32.gmra.mxu0 %v762
      %v878 = vpop.f32.mrf.mxu0
      %v879 = vadd.f32 0.0, %v878
      %880 = vmatmul.f32.gmra.mxu0 %v765
      %v881 = vpop.f32.mrf.mxu0
      %v882 = vadd.f32 0.0, %v881
      %883 = vmatmul.f32.gmra.mxu0 %v768
      %v884 = vpop.f32.mrf.mxu0
      %v885 = vadd.f32 0.0, %v884
      %886 = vmatmul.f32.gmra.mxu0 %v771
      %v887 = vpop.f32.mrf.mxu0
      %v888 = vadd.f32 0.0, %v887
      %889 = vmatmul.f32.gmra.mxu0 %v774
      %v890 = vpop.f32.mrf.mxu0
      %v891 = vadd.f32 0.0, %v890
      %892 = vmatmul.f32.gmra.mxu0 %v777
      %v893 = vpop.f32.mrf.mxu0
      %v894 = vadd.f32 0.0, %v893
      %895 = vmatmul.f32.gmra.mxu0 %v780
      %v896 = vpop.f32.mrf.mxu0
      %v897 = vadd.f32 0.0, %v896
      %898 = vmatmul.f32.gmra.mxu0 %v783
      %v899 = vpop.f32.mrf.mxu0
      %v900 = vadd.f32 0.0, %v899
      %901 = vmatmul.f32.gmra.mxu0 %v786
      %v902 = vpop.f32.mrf.mxu0
      %v903 = vadd.f32 0.0, %v902
      %904 = vmatmul.f32.gmra.mxu0 %v789
      %v905 = vpop.f32.mrf.mxu0
      %v906 = vadd.f32 0.0, %v905
      %907 = vmatmul.f32.gmra.mxu0 %v792
      %v908 = vpop.f32.mrf.mxu0
      %v909 = vadd.f32 0.0, %v908
      %910 = vmatmul.f32.gmra.mxu0 %v795
      %v911 = vpop.f32.mrf.mxu0
      %v912 = vadd.f32 0.0, %v911
      %913 = vmatmul.f32.gmra.mxu0 %v798
      %v914 = vpop.f32.mrf.mxu0
      %v915 = vadd.f32 0.0, %v914
      %916 = vmatmul.f32.gmra.mxu0 %v801
      %v917 = vpop.f32.mrf.mxu0
      %v918 = vadd.f32 0.0, %v917
      %919 = vmatmul.f32.gmra.mxu0 %v804
      %v920 = vpop.f32.mrf.mxu0
      %v921 = vadd.f32 0.0, %v920
      %922 = vmatmul.f32.gmra.mxu0 %v807
      %v923 = vpop.f32.mrf.mxu0
      %v924 = vadd.f32 0.0, %v923
      %925 = vmatmul.f32.gmra.mxu0 %v810
      %v926 = vpop.f32.mrf.mxu0
      %v927 = vadd.f32 0.0, %v926
      %928 = vmatmul.f32.gmra.mxu0 %v813
      %v929 = vpop.f32.mrf.mxu0
      %v930 = vadd.f32 0.0, %v929
      %931 = vmatmul.f32.gmra.mxu0 %v816
      %v932 = vpop.f32.mrf.mxu0
      %v933 = vadd.f32 0.0, %v932
      %934 = vmatmul.f32.gmra.mxu0 %v819
      %v935 = vpop.f32.mrf.mxu0
      %v936 = vadd.f32 0.0, %v935
      %937 = vdwg.mxu0
      %v939 = vsel %vm821, %v720, 0
      %941 = vmatpush.msra.mxu0 0.0
      %942 = vmatpush.msra.mxu0 0.0
      %943 = vmatpush.msra.mxu0 0.0
      %944 = vmatpush.msra.mxu0 0.0
      %945 = vmatpush.msra.mxu0 0.0
      %946 = vmatpush.msra.mxu0 0.0
      %947 = vmatpush.msra.mxu0 0.0
      %948 = vmatpush.msra.mxu0 0.0
      %949 = vmatpush.msra.mxu0 0.0
      %950 = vmatpush.msra.mxu0 0.0
      %951 = vmatpush.msra.mxu0 0.0
      %952 = vmatpush.msra.mxu0 0.0
      %953 = vmatpush.msra.mxu0 0.0
      %954 = vmatpush.msra.mxu0 0.0
      %955 = vmatpush.msra.mxu0 %v939
      %956 = vmatpush.msra.mxu0 %v719
      %957 = vmatmul.f32.gmra.mxu0 %v732
      %v958 = vpop.f32.mrf.mxu0
      %v959 = vadd.f32 %v843, %v958
      %960 = vmatmul.f32.gmra.mxu0 %v735
      %v961 = vpop.f32.mrf.mxu0
      %v962 = vadd.f32 %v846, %v961
      %963 = vmatmul.f32.gmra.mxu0 %v726
      %v964 = vpop.f32.mrf.mxu0
      %v965 = vadd.f32 %v849, %v964
      %966 = vmatmul.f32.gmra.mxu0 %v729
      %v967 = vpop.f32.mrf.mxu0
      %v968 = vadd.f32 %v852, %v967
      %969 = vmatmul.f32.gmra.mxu0 %v732
      %v970 = vpop.f32.mrf.mxu0
      %v971 = vadd.f32 %v855, %v970
      %972 = vmatmul.f32.gmra.mxu0 %v735
      %v973 = vpop.f32.mrf.mxu0
      %v974 = vadd.f32 %v858, %v973
      %975 = vmatmul.f32.gmra.mxu0 %v738
      %v976 = vpop.f32.mrf.mxu0
      %v977 = vadd.f32 %v861, %v976
      %978 = vmatmul.f32.gmra.mxu0 %v741
      %v979 = vpop.f32.mrf.mxu0
      %v980 = vadd.f32 %v864, %v979
      %981 = vmatmul.f32.gmra.mxu0 %v744
      %v982 = vpop.f32.mrf.mxu0
      %v983 = vadd.f32 %v867, %v982
      %984 = vmatmul.f32.gmra.mxu0 %v747
      %v985 = vpop.f32.mrf.mxu0
      %v986 = vadd.f32 %v870, %v985
      %987 = vmatmul.f32.gmra.mxu0 %v750
      %v988 = vpop.f32.mrf.mxu0
      %v989 = vadd.f32 %v873, %v988
      %990 = vmatmul.f32.gmra.mxu0 %v753
      %v991 = vpop.f32.mrf.mxu0
      %v992 = vadd.f32 %v876, %v991
      %993 = vmatmul.f32.gmra.mxu0 %v756
      %v994 = vpop.f32.mrf.mxu0
      %v995 = vadd.f32 %v879, %v994
      %996 = vmatmul.f32.gmra.mxu0 %v759
      %v997 = vpop.f32.mrf.mxu0
      %v998 = vadd.f32 %v882, %v997
      %999 = vmatmul.f32.gmra.mxu0 %v762
      %v1000 = vpop.f32.mrf.mxu0
      %v1001 = vadd.f32 %v885, %v1000
      %1002 = vmatmul.f32.gmra.mxu0 %v765
      %v1003 = vpop.f32.mrf.mxu0
      %v1004 = vadd.f32 %v888, %v1003
      %1005 = vmatmul.f32.gmra.mxu0 %v768
      %v1006 = vpop.f32.mrf.mxu0
      %v1007 = vadd.f32 %v891, %v1006
      %1008 = vmatmul.f32.gmra.mxu0 %v771
      %v1009 = vpop.f32.mrf.mxu0
      %v1010 = vadd.f32 %v894, %v1009
      %1011 = vmatmul.f32.gmra.mxu0 %v774
      %v1012 = vpop.f32.mrf.mxu0
      %v1013 = vadd.f32 %v897, %v1012
      %1014 = vmatmul.f32.gmra.mxu0 %v777
      %v1015 = vpop.f32.mrf.mxu0
      %v1016 = vadd.f32 %v900, %v1015
      %1017 = vmatmul.f32.gmra.mxu0 %v780
      %v1018 = vpop.f32.mrf.mxu0
      %v1019 = vadd.f32 %v903, %v1018
      %1020 = vmatmul.f32.gmra.mxu0 %v783
      %v1021 = vpop.f32.mrf.mxu0
      %v1022 = vadd.f32 %v906, %v1021
      %1023 = vmatmul.f32.gmra.mxu0 %v786
      %v1024 = vpop.f32.mrf.mxu0
      %v1025 = vadd.f32 %v909, %v1024
      %1026 = vmatmul.f32.gmra.mxu0 %v789
      %v1027 = vpop.f32.mrf.mxu0
      %v1028 = vadd.f32 %v912, %v1027
      %1029 = vmatmul.f32.gmra.mxu0 %v792
      %v1030 = vpop.f32.mrf.mxu0
      %v1031 = vadd.f32 %v915, %v1030
      %1032 = vmatmul.f32.gmra.mxu0 %v795
      %v1033 = vpop.f32.mrf.mxu0
      %v1034 = vadd.f32 %v918, %v1033
      %1035 = vmatmul.f32.gmra.mxu0 %v798
      %v1036 = vpop.f32.mrf.mxu0
      %v1037 = vadd.f32 %v921, %v1036
      %1038 = vmatmul.f32.gmra.mxu0 %v801
      %v1039 = vpop.f32.mrf.mxu0
      %v1040 = vadd.f32 %v924, %v1039
      %1041 = vmatmul.f32.gmra.mxu0 %v804
      %v1042 = vpop.f32.mrf.mxu0
      %v1043 = vadd.f32 %v927, %v1042
      %1044 = vmatmul.f32.gmra.mxu0 %v807
      %v1045 = vpop.f32.mrf.mxu0
      %v1046 = vadd.f32 %v930, %v1045
      %1047 = vmatmul.f32.gmra.mxu0 %v810
      %v1048 = vpop.f32.mrf.mxu0
      %v1049 = vadd.f32 %v933, %v1048
      %1050 = vmatmul.f32.gmra.mxu0 %v813
      %v1051 = vpop.f32.mrf.mxu0
      %v1052 = vadd.f32 %v936, %v1051
      %1053 = vdwg.mxu0
      %s1054 = scalar_lea.vmem %s1, 32
      %v1055 = vld [vmem:[%s1054] sm:$0xff]
      %v1056 = vld [vmem:[%s1054 + $0x8] sm:$0xf]
      %v1058 = vsel %vm821, %v1056, 0
      %1060 = vmatpush.msra.mxu0 0.0
      %1061 = vmatpush.msra.mxu0 0.0
      %1062 = vmatpush.msra.mxu0 0.0
      %1063 = vmatpush.msra.mxu0 0.0
      %1064 = vmatpush.msra.mxu0 0.0
      %1065 = vmatpush.msra.mxu0 0.0
      %1066 = vmatpush.msra.mxu0 0.0
      %1067 = vmatpush.msra.mxu0 0.0
      %1068 = vmatpush.msra.mxu0 0.0
      %1069 = vmatpush.msra.mxu0 0.0
      %1070 = vmatpush.msra.mxu0 0.0
      %1071 = vmatpush.msra.mxu0 0.0
      %1072 = vmatpush.msra.mxu0 0.0
      %1073 = vmatpush.msra.mxu0 0.0
      %1074 = vmatpush.msra.mxu0 %v1058
      %1075 = vmatpush.msra.mxu0 %v1055
      %1076 = vmatmul.f32.gmra.mxu0 %v732
      %v1077 = vpop.f32.mrf.mxu0
      %v1078 = vadd.f32 0.0, %v1077
      %1079 = vmatmul.f32.gmra.mxu0 %v735
      %v1080 = vpop.f32.mrf.mxu0
      %v1081 = vadd.f32 0.0, %v1080
      %1082 = vmatmul.f32.gmra.mxu0 %v738
      %v1083 = vpop.f32.mrf.mxu0
      %v1084 = vadd.f32 0.0, %v1083
      %1085 = vmatmul.f32.gmra.mxu0 %v741
      %v1086 = vpop.f32.mrf.mxu0
      %v1087 = vadd.f32 0.0, %v1086
      %1088 = vmatmul.f32.gmra.mxu0 %v744
      %v1089 = vpop.f32.mrf.mxu0
      %v1090 = vadd.f32 0.0, %v1089
      %1091 = vmatmul.f32.gmra.mxu0 %v747
      %v1092 = vpop.f32.mrf.mxu0
      %v1093 = vadd.f32 0.0, %v1092
      %1094 = vmatmul.f32.gmra.mxu0 %v750
      %v1095 = vpop.f32.mrf.mxu0
      %v1096 = vadd.f32 0.0, %v1095
      %1097 = vmatmul.f32.gmra.mxu0 %v753
      %v1098 = vpop.f32.mrf.mxu0
      %v1099 = vadd.f32 0.0, %v1098
      %1100 = vmatmul.f32.gmra.mxu0 %v756
      %v1101 = vpop.f32.mrf.mxu0
      %v1102 = vadd.f32 0.0, %v1101
      %1103 = vmatmul.f32.gmra.mxu0 %v759
      %v1104 = vpop.f32.mrf.mxu0
      %v1105 = vadd.f32 0.0, %v1104
      %1106 = vmatmul.f32.gmra.mxu0 %v762
      %v1107 = vpop.f32.mrf.mxu0
      %v1108 = vadd.f32 0.0, %v1107
      %1109 = vmatmul.f32.gmra.mxu0 %v765
      %v1110 = vpop.f32.mrf.mxu0
      %v1111 = vadd.f32 0.0, %v1110
      %1112 = vmatmul.f32.gmra.mxu0 %v768
      %v1113 = vpop.f32.mrf.mxu0
      %v1114 = vadd.f32 0.0, %v1113
      %1115 = vmatmul.f32.gmra.mxu0 %v771
      %v1116 = vpop.f32.mrf.mxu0
      %v1117 = vadd.f32 0.0, %v1116
      %1118 = vmatmul.f32.gmra.mxu0 %v774
      %v1119 = vpop.f32.mrf.mxu0
      %v1120 = vadd.f32 0.0, %v1119
      %1121 = vmatmul.f32.gmra.mxu0 %v777
      %v1122 = vpop.f32.mrf.mxu0
      %v1123 = vadd.f32 0.0, %v1122
      %1124 = vmatmul.f32.gmra.mxu0 %v780
      %v1125 = vpop.f32.mrf.mxu0
      %v1126 = vadd.f32 0.0, %v1125
      %1127 = vmatmul.f32.gmra.mxu0 %v783
      %v1128 = vpop.f32.mrf.mxu0
      %v1129 = vadd.f32 0.0, %v1128
      %1130 = vmatmul.f32.gmra.mxu0 %v786
      %v1131 = vpop.f32.mrf.mxu0
      %v1132 = vadd.f32 0.0, %v1131
      %1133 = vmatmul.f32.gmra.mxu0 %v789
      %v1134 = vpop.f32.mrf.mxu0
      %v1135 = vadd.f32 0.0, %v1134
      %1136 = vmatmul.f32.gmra.mxu0 %v792
      %v1137 = vpop.f32.mrf.mxu0
      %v1138 = vadd.f32 0.0, %v1137
      %1139 = vmatmul.f32.gmra.mxu0 %v795
      %v1140 = vpop.f32.mrf.mxu0
      %v1141 = vadd.f32 0.0, %v1140
      %1142 = vmatmul.f32.gmra.mxu0 %v798
      %v1143 = vpop.f32.mrf.mxu0
      %v1144 = vadd.f32 0.0, %v1143
      %1145 = vmatmul.f32.gmra.mxu0 %v801
      %v1146 = vpop.f32.mrf.mxu0
      %v1147 = vadd.f32 0.0, %v1146
      %1148 = vmatmul.f32.gmra.mxu0 %v804
      %v1149 = vpop.f32.mrf.mxu0
      %v1150 = vadd.f32 0.0, %v1149
      %1151 = vmatmul.f32.gmra.mxu0 %v807
      %v1152 = vpop.f32.mrf.mxu0
      %v1153 = vadd.f32 0.0, %v1152
      %1154 = vmatmul.f32.gmra.mxu0 %v810
      %v1155 = vpop.f32.mrf.mxu0
      %v1156 = vadd.f32 0.0, %v1155
      %1157 = vmatmul.f32.gmra.mxu0 %v813
      %v1158 = vpop.f32.mrf.mxu0
      %v1159 = vadd.f32 0.0, %v1158
      %1160 = vmatmul.f32.gmra.mxu0 %v816
      %v1161 = vpop.f32.mrf.mxu0
      %v1162 = vadd.f32 0.0, %v1161
      %1163 = vmatmul.f32.gmra.mxu0 %v819
      %v1164 = vpop.f32.mrf.mxu0
      %v1165 = vadd.f32 0.0, %v1164
      %1166 = vmatmul.f32.gmra.mxu0 %v810
      %v1167 = vpop.f32.mrf.mxu0
      %v1168 = vadd.f32 0.0, %v1167
      %1169 = vmatmul.f32.gmra.mxu0 %v813
      %v1170 = vpop.f32.mrf.mxu0
      %v1171 = vadd.f32 0.0, %v1170
      %1172 = vdwg.mxu0
      %v1173 = vadd.f32 %v959, %v1078
      %v1174 = vadd.f32 %v962, %v1081
      %v1175 = vadd.f32 %v965, %v1084
      %v1176 = vadd.f32 %v968, %v1087
      %v1177 = vadd.f32 %v971, %v1090
      %v1178 = vadd.f32 %v974, %v1093
      %v1179 = vadd.f32 %v977, %v1096
      %v1180 = vadd.f32 %v980, %v1099
      %v1181 = vadd.f32 %v983, %v1102
      %v1182 = vadd.f32 %v986, %v1105
      %v1183 = vadd.f32 %v989, %v1108
      %v1184 = vadd.f32 %v992, %v1111
      %v1185 = vadd.f32 %v995, %v1114
      %v1186 = vadd.f32 %v998, %v1117
      %v1187 = vadd.f32 %v1001, %v1120
      %v1188 = vadd.f32 %v1004, %v1123
      %v1189 = vadd.f32 %v1007, %v1126
      %v1190 = vadd.f32 %v1010, %v1129
      %v1191 = vadd.f32 %v1013, %v1132
      %v1192 = vadd.f32 %v1016, %v1135
      %v1193 = vadd.f32 %v1019, %v1138
      %v1194 = vadd.f32 %v1022, %v1141
      %v1195 = vadd.f32 %v1025, %v1144
      %v1196 = vadd.f32 %v1028, %v1147
      %v1197 = vadd.f32 %v1031, %v1150
      %v1198 = vadd.f32 %v1034, %v1153
      %v1199 = vadd.f32 %v1037, %v1156
      %v1200 = vadd.f32 %v1040, %v1159
      %v1201 = vadd.f32 %v1043, %v1162
      %v1202 = vadd.f32 %v1046, %v1165
      %v1203 = vadd.f32 %v1049, %v1168
      %v1204 = vadd.f32 %v1052, %v1171
      %v1205 = vsel %vm653, %v1173, 0.0
      %v1206 = vsel %vm653, %v1174, 0.0
      %v1207 = vadd.f32 %v1205, %v1206
      %v1208 = vsel %vm653, %v1175, 0.0
      %v1209 = vadd.f32 %v1207, %v1208
      %v1210 = vsel %vm653, %v1176, 0.0
      %v1211 = vadd.f32 %v1209, %v1210
      %v1212 = vsel %vm653, %v1177, 0.0
      %v1213 = vadd.f32 %v1211, %v1212
      %v1214 = vsel %vm653, %v1178, 0.0
      %v1215 = vadd.f32 %v1213, %v1214
      %v1216 = vsel %vm653, %v1179, 0.0
      %v1217 = vadd.f32 %v1215, %v1216
      %v1218 = vsel %vm653, %v1180, 0.0
      %v1219 = vadd.f32 %v1217, %v1218
      %v1220 = vsel %vm653, %v1181, 0.0
      %v1221 = vadd.f32 %v1219, %v1220
      %v1222 = vsel %vm653, %v1182, 0.0
      %v1223 = vadd.f32 %v1221, %v1222
      %v1224 = vsel %vm653, %v1183, 0.0
      %v1225 = vadd.f32 %v1223, %v1224
      %v1226 = vsel %vm653, %v1184, 0.0
      %v1227 = vadd.f32 %v1225, %v1226
      %v1228 = vsel %vm653, %v1185, 0.0
      %v1229 = vadd.f32 %v1227, %v1228
      %v1230 = vsel %vm653, %v1186, 0.0
      %v1231 = vadd.f32 %v1229, %v1230
      %v1232 = vsel %vm653, %v1187, 0.0
      %v1233 = vadd.f32 %v1231, %v1232
      %v1234 = vsel %vm653, %v1188, 0.0
      %v1235 = vadd.f32 %v1233, %v1234
      %v1236 = vsel %vm653, %v1189, 0.0
      %v1237 = vadd.f32 %v1235, %v1236
      %v1238 = vsel %vm653, %v1190, 0.0
      %v1239 = vadd.f32 %v1237, %v1238
      %v1240 = vsel %vm653, %v1191, 0.0
      %v1241 = vadd.f32 %v1239, %v1240
      %v1242 = vsel %vm653, %v1192, 0.0
      %v1243 = vadd.f32 %v1241, %v1242
      %v1244 = vsel %vm653, %v1193, 0.0
      %v1245 = vadd.f32 %v1243, %v1244
      %v1246 = vsel %vm653, %v1194, 0.0
      %v1247 = vadd.f32 %v1245, %v1246
      %v1248 = vsel %vm653, %v1195, 0.0
      %v1249 = vadd.f32 %v1247, %v1248
      %v1250 = vsel %vm653, %v1196, 0.0
      %v1251 = vadd.f32 %v1249, %v1250
      %v1252 = vsel %vm653, %v1197, 0.0
      %v1253 = vadd.f32 %v1251, %v1252
      %v1254 = vsel %vm653, %v1198, 0.0
      %v1255 = vadd.f32 %v1253, %v1254
      %v1256 = vsel %vm653, %v1199, 0.0
      %v1257 = vadd.f32 %v1255, %v1256
      %v1258 = vsel %vm653, %v1200, 0.0
      %v1259 = vadd.f32 %v1257, %v1258
      %v1260 = vsel %vm653, %v1201, 0.0
      %v1261 = vadd.f32 %v1259, %v1260
      %v1262 = vsel %vm653, %v1202, 0.0
      %v1263 = vadd.f32 %v1261, %v1262
      %v1264 = vsel %vm653, %v1203, 0.0
      %v1265 = vadd.f32 %v1263, %v1264
      %v1266 = vsel %vm653, %v1204, 0.0
      %v1267 = vadd.f32 %v1265, %v1266
      %v1268 = vrot.slane %v1267, 4
      %v1269 = vadd.f32 %v1267, %v1268
      %v1270 = vrot.slane %v1269, 2
      %v1271 = vadd.f32 %v1269, %v1270
      %v1272 = vrot.slane %v1271, 1
      %v1273 = vadd.f32 %v1271, %v1272
      %v1274 = vmul.f32 %v1273, 0.00390625
      %v1275 = vsub.f32 %v1173, %v1274
      %v1276 = vsub.f32 %v1174, %v1274
      %v1277 = vsub.f32 %v1175, %v1274
      %v1278 = vsub.f32 %v1176, %v1274
      %v1279 = vsub.f32 %v1177, %v1274
      %v1280 = vsub.f32 %v1178, %v1274
      %v1281 = vsub.f32 %v1179, %v1274
      %v1282 = vsub.f32 %v1180, %v1274
      %v1283 = vsub.f32 %v1181, %v1274
      %v1284 = vsub.f32 %v1182, %v1274
      %v1285 = vsub.f32 %v1183, %v1274
      %v1286 = vsub.f32 %v1184, %v1274
      %v1287 = vsub.f32 %v1185, %v1274
      %v1288 = vsub.f32 %v1186, %v1274
      %v1289 = vsub.f32 %v1187, %v1274
      %v1290 = vsub.f32 %v1188, %v1274
      %v1291 = vsub.f32 %v1189, %v1274
      %v1292 = vsub.f32 %v1190, %v1274
      %v1293 = vsub.f32 %v1191, %v1274
      %v1294 = vsub.f32 %v1192, %v1274
      %v1295 = vsub.f32 %v1193, %v1274
      %v1296 = vsub.f32 %v1194, %v1274
      %v1297 = vsub.f32 %v1195, %v1274
      %v1298 = vsub.f32 %v1196, %v1274
      %v1299 = vsub.f32 %v1197, %v1274
      %v1300 = vsub.f32 %v1198, %v1274
      %v1301 = vsub.f32 %v1199, %v1274
      %v1302 = vsub.f32 %v1200, %v1274
      %v1303 = vsub.f32 %v1201, %v1274
      %v1304 = vsub.f32 %v1202, %v1274
      %v1305 = vsub.f32 %v1203, %v1274
      %v1306 = vsub.f32 %v1204, %v1274
      %v1307 = vmul.f32 %v1275, %v1275
      %v1308 = vmul.f32 %v1276, %v1276
      %v1309 = vmul.f32 %v1277, %v1277
      %v1310 = vmul.f32 %v1278, %v1278
      %v1311 = vmul.f32 %v1279, %v1279
      %v1312 = vmul.f32 %v1280, %v1280
      %v1313 = vmul.f32 %v1281, %v1281
      %v1314 = vmul.f32 %v1282, %v1282
      %v1315 = vmul.f32 %v1283, %v1283
      %v1316 = vmul.f32 %v1284, %v1284
      %v1317 = vmul.f32 %v1285, %v1285
      %v1318 = vmul.f32 %v1286, %v1286
      %v1319 = vmul.f32 %v1287, %v1287
      %v1320 = vmul.f32 %v1288, %v1288
      %v1321 = vmul.f32 %v1289, %v1289
      %v1322 = vmul.f32 %v1290, %v1290
      %v1323 = vmul.f32 %v1291, %v1291
      %v1324 = vmul.f32 %v1292, %v1292
      %v1325 = vmul.f32 %v1293, %v1293
      %v1326 = vmul.f32 %v1294, %v1294
      %v1327 = vmul.f32 %v1295, %v1295
      %v1328 = vmul.f32 %v1296, %v1296
      %v1329 = vmul.f32 %v1297, %v1297
      %v1330 = vmul.f32 %v1298, %v1298
      %v1331 = vmul.f32 %v1299, %v1299
      %v1332 = vmul.f32 %v1300, %v1300
      %v1333 = vmul.f32 %v1301, %v1301
      %v1334 = vmul.f32 %v1302, %v1302
      %v1335 = vmul.f32 %v1303, %v1303
      %v1336 = vmul.f32 %v1304, %v1304
      %v1337 = vmul.f32 %v1305, %v1305
      %v1338 = vmul.f32 %v1306, %v1306
      %v1339 = vsel %vm653, %v1307, 0.0
      %v1340 = vsel %vm653, %v1308, 0.0
      %v1341 = vadd.f32 %v1339, %v1340
      %v1342 = vsel %vm653, %v1309, 0.0
      %v1343 = vadd.f32 %v1341, %v1342
      %v1344 = vsel %vm653, %v1310, 0.0
      %v1345 = vadd.f32 %v1343, %v1344
      %v1346 = vsel %vm653, %v1311, 0.0
      %v1347 = vadd.f32 %v1345, %v1346
      %v1348 = vsel %vm653, %v1312, 0.0
      %v1349 = vadd.f32 %v1347, %v1348
      %v1350 = vsel %vm653, %v1313, 0.0
      %v1351 = vadd.f32 %v1349, %v1350
      %v1352 = vsel %vm653, %v1314, 0.0
      %v1353 = vadd.f32 %v1351, %v1352
      %v1354 = vsel %vm653, %v1315, 0.0
      %v1355 = vadd.f32 %v1353, %v1354
      %v1356 = vsel %vm653, %v1316, 0.0
      %v1357 = vadd.f32 %v1355, %v1356
      %v1358 = vsel %vm653, %v1317, 0.0
      %v1359 = vadd.f32 %v1357, %v1358
      %v1360 = vsel %vm653, %v1318, 0.0
      %v1361 = vadd.f32 %v1359, %v1360
      %v1362 = vsel %vm653, %v1319, 0.0
      %v1363 = vadd.f32 %v1361, %v1362
      %v1364 = vsel %vm653, %v1320, 0.0
      %v1365 = vadd.f32 %v1363, %v1364
      %v1366 = vsel %vm653, %v1321, 0.0
      %v1367 = vadd.f32 %v1365, %v1366
      %v1368 = vsel %vm653, %v1322, 0.0
      %v1369 = vadd.f32 %v1367, %v1368
      %v1370 = vsel %vm653, %v1323, 0.0
      %v1371 = vadd.f32 %v1369, %v1370
      %v1372 = vsel %vm653, %v1324, 0.0
      %v1373 = vadd.f32 %v1371, %v1372
      %v1374 = vsel %vm653, %v1325, 0.0
      %v1375 = vadd.f32 %v1373, %v1374
      %v1376 = vsel %vm653, %v1326, 0.0
      %v1377 = vadd.f32 %v1375, %v1376
      %v1378 = vsel %vm653, %v1327, 0.0
      %v1379 = vadd.f32 %v1377, %v1378
      %v1380 = vsel %vm653, %v1328, 0.0
      %v1381 = vadd.f32 %v1379, %v1380
      %v1382 = vsel %vm653, %v1329, 0.0
      %v1383 = vadd.f32 %v1381, %v1382
      %v1384 = vsel %vm653, %v1330, 0.0
      %v1385 = vadd.f32 %v1383, %v1384
      %v1386 = vsel %vm653, %v1331, 0.0
      %v1387 = vadd.f32 %v1385, %v1386
      %v1388 = vsel %vm653, %v1332, 0.0
      %v1389 = vadd.f32 %v1387, %v1388
      %v1390 = vsel %vm653, %v1333, 0.0
      %v1391 = vadd.f32 %v1389, %v1390
      %v1392 = vsel %vm653, %v1334, 0.0
      %v1393 = vadd.f32 %v1391, %v1392
      %v1394 = vsel %vm653, %v1335, 0.0
      %v1395 = vadd.f32 %v1393, %v1394
      %v1396 = vsel %vm653, %v1336, 0.0
      %v1397 = vadd.f32 %v1395, %v1396
      %v1398 = vsel %vm653, %v1337, 0.0
      %v1399 = vadd.f32 %v1397, %v1398
      %v1400 = vsel %vm653, %v1338, 0.0
      %v1401 = vadd.f32 %v1399, %v1400
      %v1402 = vrot.slane %v1401, 4
      %v1403 = vadd.f32 %v1401, %v1402
      %v1404 = vrot.slane %v1403, 2
      %v1405 = vadd.f32 %v1403, %v1404
      %v1406 = vrot.slane %v1405, 1
      %v1407 = vadd.f32 %v1405, %v1406
      %v1408 = vmul.f32 %v1407, 0.00390625
      %v1409 = vadd.f32 %v1408, 1e-05
      %v1410 = vrsqrt.pop %v1409
      %v1411 = vmul.f32 %v1410, %v1409
      %v1412 = vmul.f32 %v1411, %v1410
      %v1413 = vmul.f32 0.5, %v1412
      %v1414 = vsub.f32 1.5, %v1413
      %v1415 = vmul.f32 %v1410, %v1414
      %vm1416 = vweird.f32 %v1409
      %vm1417 = vweird.f32 %v1410
      %vm1418 = vmor %vm1416, %vm1417
      %v1419 = vsel %vm1418, %v1410, %v1415
      %v1420 = vmul.f32 %v1275, %v1419
      %v1421 = vmul.f32 %v1276, %v1419
      %v1422 = vmul.f32 %v1277, %v1419
      %v1423 = vmul.f32 %v1278, %v1419
      %v1424 = vmul.f32 %v1279, %v1419
      %v1425 = vmul.f32 %v1280, %v1419
      %v1426 = vmul.f32 %v1281, %v1419
      %v1427 = vmul.f32 %v1282, %v1419
      %v1428 = vmul.f32 %v1283, %v1419
      %v1429 = vmul.f32 %v1284, %v1419
      %v1430 = vmul.f32 %v1285, %v1419
      %v1431 = vmul.f32 %v1286, %v1419
      %v1432 = vmul.f32 %v1287, %v1419
      %v1433 = vmul.f32 %v1288, %v1419
      %v1434 = vmul.f32 %v1289, %v1419
      %v1435 = vmul.f32 %v1290, %v1419
      %v1436 = vmul.f32 %v1291, %v1419
      %v1437 = vmul.f32 %v1292, %v1419
      %v1438 = vmul.f32 %v1293, %v1419
      %v1439 = vmul.f32 %v1294, %v1419
      %v1440 = vmul.f32 %v1295, %v1419
      %v1441 = vmul.f32 %v1296, %v1419
      %v1442 = vmul.f32 %v1297, %v1419
      %v1443 = vmul.f32 %v1298, %v1419
      %v1444 = vmul.f32 %v1299, %v1419
      %v1445 = vmul.f32 %v1300, %v1419
      %v1446 = vmul.f32 %v1301, %v1419
      %v1447 = vmul.f32 %v1302, %v1419
      %v1448 = vmul.f32 %v1303, %v1419
      %v1449 = vmul.f32 %v1304, %v1419
      %v1450 = vmul.f32 %v1305, %v1419
      %v1451 = vmul.f32 %v1306, %v1419
      %v1452 = vmax.f32 %v1420, 0.0
      %v1453 = vmax.f32 %v1421, 0.0
      %v1454 = vmax.f32 %v1422, 0.0
      %v1455 = vmax.f32 %v1423, 0.0
      %v1456 = vmax.f32 %v1424, 0.0
      %v1457 = vmax.f32 %v1425, 0.0
      %v1458 = vmax.f32 %v1426, 0.0
      %v1459 = vmax.f32 %v1427, 0.0
      %v1460 = vmax.f32 %v1428, 0.0
      %v1461 = vmax.f32 %v1429, 0.0
      %v1462 = vmax.f32 %v1430, 0.0
      %v1463 = vmax.f32 %v1431, 0.0
      %v1464 = vmax.f32 %v1432, 0.0
      %v1465 = vmax.f32 %v1433, 0.0
      %v1466 = vmax.f32 %v1434, 0.0
      %v1467 = vmax.f32 %v1435, 0.0
      %v1468 = vmax.f32 %v1436, 0.0
      %v1469 = vmax.f32 %v1437, 0.0
      %v1470 = vmax.f32 %v1438, 0.0
      %v1471 = vmax.f32 %v1439, 0.0
      %v1472 = vmax.f32 %v1440, 0.0
      %v1473 = vmax.f32 %v1441, 0.0
      %v1474 = vmax.f32 %v1442, 0.0
      %v1475 = vmax.f32 %v1443, 0.0
      %v1476 = vmax.f32 %v1444, 0.0
      %v1477 = vmax.f32 %v1445, 0.0
      %v1478 = vmax.f32 %v1446, 0.0
      %v1479 = vmax.f32 %v1447, 0.0
      %v1480 = vmax.f32 %v1448, 0.0
      %v1481 = vmax.f32 %v1449, 0.0
      %v1482 = vmax.f32 %v1450, 0.0
      %v1483 = vmax.f32 %v1451, 0.0
      %v1500 = vrot.slane %v1454, 1
      %v1501 = vrot.slane %v1452, 1
      %v1502 = vrot.slane %v1456, 1
      %v1503 = vrot.slane %v1458, 1
      %v1504 = vrot.slane %v1460, 1
      %v1505 = vrot.slane %v1462, 1
      %v1506 = vrot.slane %v1464, 1
      %v1507 = vrot.slane %v1466, 1
      %v1508 = vrot.slane %v1468, 1
      %v1509 = vrot.slane %v1470, 1
      %v1510 = vrot.slane %v1472, 1
      %v1511 = vrot.slane %v1474, 1
      %v1512 = vrot.slane %v1476, 1
      %v1513 = vrot.slane %v1478, 1
      %v1514 = vrot.slane %v1480, 1
      %v1515 = vrot.slane %v1482, 1
      %v1548 = vrot.slane %v1454, 7
      %v1549 = vrot.slane %v1455, 7
      %v1550 = vsel %vm267, %v1548, %v1549
      %v1551 = vrot.slane %v1452, 7
      %v1552 = vrot.slane %v1453, 7
      %v1553 = vsel %vm267, %v1551, %v1552
      %v1554 = vrot.slane %v1456, 7
      %v1555 = vrot.slane %v1457, 7
      %v1556 = vsel %vm267, %v1554, %v1555
      %v1557 = vrot.slane %v1458, 7
      %v1558 = vrot.slane %v1459, 7
      %v1559 = vsel %vm267, %v1557, %v1558
      %v1560 = vrot.slane %v1460, 7
      %v1561 = vrot.slane %v1461, 7
      %v1562 = vsel %vm267, %v1560, %v1561
      %v1563 = vrot.slane %v1462, 7
      %v1564 = vrot.slane %v1463, 7
      %v1565 = vsel %vm267, %v1563, %v1564
      %v1566 = vrot.slane %v1464, 7
      %v1567 = vrot.slane %v1465, 7
      %v1568 = vsel %vm267, %v1566, %v1567
      %v1569 = vrot.slane %v1466, 7
      %v1570 = vrot.slane %v1467, 7
      %v1571 = vsel %vm267, %v1569, %v1570
      %v1572 = vrot.slane %v1468, 7
      %v1573 = vrot.slane %v1469, 7
      %v1574 = vsel %vm267, %v1572, %v1573
      %v1575 = vrot.slane %v1470, 7
      %v1576 = vrot.slane %v1471, 7
      %v1577 = vsel %vm267, %v1575, %v1576
      %v1578 = vrot.slane %v1472, 7
      %v1579 = vrot.slane %v1473, 7
      %v1580 = vsel %vm267, %v1578, %v1579
      %v1581 = vrot.slane %v1474, 7
      %v1582 = vrot.slane %v1475, 7
      %v1583 = vsel %vm267, %v1581, %v1582
      %v1584 = vrot.slane %v1476, 7
      %v1585 = vrot.slane %v1477, 7
      %v1586 = vsel %vm267, %v1584, %v1585
      %v1587 = vrot.slane %v1478, 7
      %v1588 = vrot.slane %v1479, 7
      %v1589 = vsel %vm267, %v1587, %v1588
      %v1590 = vrot.slane %v1480, 7
      %v1591 = vrot.slane %v1481, 7
      %v1592 = vsel %vm267, %v1590, %v1591
      %v1593 = vrot.slane %v1482, 7
      %v1594 = vrot.slane %v1483, 7
      %v1595 = vsel %vm267, %v1593, %v1594
      %v1628 = vsel %vm267, %v1500, %v1548
      %v1629 = vsel %vm267, %v1501, %v1551
      %v1630 = vsel %vm267, %v1502, %v1554
      %v1631 = vsel %vm267, %v1503, %v1557
      %v1632 = vsel %vm267, %v1504, %v1560
      %v1633 = vsel %vm267, %v1505, %v1563
      %v1634 = vsel %vm267, %v1506, %v1566
      %v1635 = vsel %vm267, %v1507, %v1569
      %v1636 = vsel %vm267, %v1508, %v1572
      %v1637 = vsel %vm267, %v1509, %v1575
      %v1638 = vsel %vm267, %v1510, %v1578
      %v1639 = vsel %vm267, %v1511, %v1581
      %v1640 = vsel %vm267, %v1512, %v1584
      %v1641 = vsel %vm267, %v1513, %v1587
      %v1642 = vsel %vm267, %v1514, %v1590
      %v1643 = vsel %vm267, %v1515, %v1593
      %v1644 = vrot.slane %v1455, 1
      %v1645 = vsel %vm364, %v1500, %v1644
      %v1646 = vrot.slane %v1453, 1
      %v1647 = vsel %vm364, %v1501, %v1646
      %v1648 = vrot.slane %v1457, 1
      %v1649 = vsel %vm364, %v1502, %v1648
      %v1650 = vrot.slane %v1459, 1
      %v1651 = vsel %vm364, %v1503, %v1650
      %v1652 = vrot.slane %v1461, 1
      %v1653 = vsel %vm364, %v1504, %v1652
      %v1654 = vrot.slane %v1463, 1
      %v1655 = vsel %vm364, %v1505, %v1654
      %v1656 = vrot.slane %v1465, 1
      %v1657 = vsel %vm364, %v1506, %v1656
      %v1658 = vrot.slane %v1467, 1
      %v1659 = vsel %vm364, %v1507, %v1658
      %v1660 = vrot.slane %v1469, 1
      %v1661 = vsel %vm364, %v1508, %v1660
      %v1662 = vrot.slane %v1471, 1
      %v1663 = vsel %vm364, %v1509, %v1662
      %v1664 = vrot.slane %v1473, 1
      %v1665 = vsel %vm364, %v1510, %v1664
      %v1666 = vrot.slane %v1475, 1
      %v1667 = vsel %vm364, %v1511, %v1666
      %v1668 = vrot.slane %v1477, 1
      %v1669 = vsel %vm364, %v1512, %v1668
      %v1670 = vrot.slane %v1479, 1
      %v1671 = vsel %vm364, %v1513, %v1670
      %v1672 = vrot.slane %v1481, 1
      %v1673 = vsel %vm364, %v1514, %v1672
      %v1674 = vrot.slane %v1483, 1
      %v1675 = vsel %vm364, %v1515, %v1674
      %v1708 = vsel %vm364, %v1644, %v1549
      %v1709 = vsel %vm364, %v1646, %v1552
      %v1710 = vsel %vm364, %v1648, %v1555
      %v1711 = vsel %vm364, %v1650, %v1558
      %v1712 = vsel %vm364, %v1652, %v1561
      %v1713 = vsel %vm364, %v1654, %v1564
      %v1714 = vsel %vm364, %v1656, %v1567
      %v1715 = vsel %vm364, %v1658, %v1570
      %v1716 = vsel %vm364, %v1660, %v1573
      %v1717 = vsel %vm364, %v1662, %v1576
      %v1718 = vsel %vm364, %v1664, %v1579
      %v1719 = vsel %vm364, %v1666, %v1582
      %v1720 = vsel %vm364, %v1668, %v1585
      %v1721 = vsel %vm364, %v1670, %v1588
      %v1722 = vsel %vm364, %v1672, %v1591
      %v1723 = vsel %vm364, %v1674, %v1594
      %1724 = vrot.lane.b32.xlu0 %v1454, 4
      %v1725 = vpop.permute.xlu0 %1724
      %1726 = vrot.lane.b32.xlu0 %v1455, 4
      %v1727 = vpop.permute.xlu0 %1726
      %1728 = vrot.lane.b32.xlu0 %v1452, 4
      %v1729 = vpop.permute.xlu0 %1728
      %1730 = vrot.lane.b32.xlu0 %v1453, 4
      %v1731 = vpop.permute.xlu0 %1730
      %1732 = vrot.lane.b32.xlu0 %v1456, 4
      %v1733 = vpop.permute.xlu0 %1732
      %1734 = vrot.lane.b32.xlu0 %v1457, 4
      %v1735 = vpop.permute.xlu0 %1734
      %1736 = vrot.lane.b32.xlu0 %v1458, 4
      %v1737 = vpop.permute.xlu0 %1736
      %1738 = vrot.lane.b32.xlu0 %v1459, 4
      %v1739 = vpop.permute.xlu0 %1738
      %1740 = vrot.lane.b32.xlu0 %v1460, 4
      %v1741 = vpop.permute.xlu0 %1740
      %1742 = vrot.lane.b32.xlu0 %v1461, 4
      %v1743 = vpop.permute.xlu0 %1742
      %1744 = vrot.lane.b32.xlu0 %v1462, 4
      %v1745 = vpop.permute.xlu0 %1744
      %1746 = vrot.lane.b32.xlu0 %v1463, 4
      %v1747 = vpop.permute.xlu0 %1746
      %1748 = vrot.lane.b32.xlu0 %v1464, 4
      %v1749 = vpop.permute.xlu0 %1748
      %1750 = vrot.lane.b32.xlu0 %v1465, 4
      %v1751 = vpop.permute.xlu0 %1750
      %1752 = vrot.lane.b32.xlu0 %v1466, 4
      %v1753 = vpop.permute.xlu0 %1752
      %1754 = vrot.lane.b32.xlu0 %v1467, 4
      %v1755 = vpop.permute.xlu0 %1754
      %1756 = vrot.lane.b32.xlu0 %v1468, 4
      %v1757 = vpop.permute.xlu0 %1756
      %1758 = vrot.lane.b32.xlu0 %v1469, 4
      %v1759 = vpop.permute.xlu0 %1758
      %1760 = vrot.lane.b32.xlu0 %v1470, 4
      %v1761 = vpop.permute.xlu0 %1760
      %1762 = vrot.lane.b32.xlu0 %v1471, 4
      %v1763 = vpop.permute.xlu0 %1762
      %1764 = vrot.lane.b32.xlu0 %v1472, 4
      %v1765 = vpop.permute.xlu0 %1764
      %1766 = vrot.lane.b32.xlu0 %v1473, 4
      %v1767 = vpop.permute.xlu0 %1766
      %1768 = vrot.lane.b32.xlu0 %v1474, 4
      %v1769 = vpop.permute.xlu0 %1768
      %1770 = vrot.lane.b32.xlu0 %v1475, 4
      %v1771 = vpop.permute.xlu0 %1770
      %1772 = vrot.lane.b32.xlu0 %v1476, 4
      %v1773 = vpop.permute.xlu0 %1772
      %1774 = vrot.lane.b32.xlu0 %v1477, 4
      %v1775 = vpop.permute.xlu0 %1774
      %1776 = vrot.lane.b32.xlu0 %v1478, 4
      %v1777 = vpop.permute.xlu0 %1776
      %1778 = vrot.lane.b32.xlu0 %v1479, 4
      %v1779 = vpop.permute.xlu0 %1778
      %1780 = vrot.lane.b32.xlu0 %v1480, 4
      %v1781 = vpop.permute.xlu0 %1780
      %1782 = vrot.lane.b32.xlu0 %v1481, 4
      %v1783 = vpop.permute.xlu0 %1782
      %1784 = vrot.lane.b32.xlu0 %v1482, 4
      %v1785 = vpop.permute.xlu0 %1784
      %1786 = vrot.lane.b32.xlu0 %v1483, 4
      %v1787 = vpop.permute.xlu0 %1786
      %1836 = vrot.lane.b32.xlu0 %v1645, 8
      %v1837 = vpop.permute.xlu0 %1836
      %1838 = vrot.lane.b32.xlu0 %v1708, 8
      %v1839 = vpop.permute.xlu0 %1838
      %1840 = vrot.lane.b32.xlu0 %v1647, 8
      %v1841 = vpop.permute.xlu0 %1840
      %1842 = vrot.lane.b32.xlu0 %v1709, 8
      %v1843 = vpop.permute.xlu0 %1842
      %1844 = vrot.lane.b32.xlu0 %v1649, 8
      %v1845 = vpop.permute.xlu0 %1844
      %1846 = vrot.lane.b32.xlu0 %v1710, 8
      %v1847 = vpop.permute.xlu0 %1846
      %1848 = vrot.lane.b32.xlu0 %v1651, 8
      %v1849 = vpop.permute.xlu0 %1848
      %1850 = vrot.lane.b32.xlu0 %v1711, 8
      %v1851 = vpop.permute.xlu0 %1850
      %1852 = vrot.lane.b32.xlu0 %v1653, 8
      %v1853 = vpop.permute.xlu0 %1852
      %1854 = vrot.lane.b32.xlu0 %v1712, 8
      %v1855 = vpop.permute.xlu0 %1854
      %1856 = vrot.lane.b32.xlu0 %v1655, 8
      %v1857 = vpop.permute.xlu0 %1856
      %1858 = vrot.lane.b32.xlu0 %v1713, 8
      %v1859 = vpop.permute.xlu0 %1858
      %1860 = vrot.lane.b32.xlu0 %v1657, 8
      %v1861 = vpop.permute.xlu0 %1860
      %1862 = vrot.lane.b32.xlu0 %v1714, 8
      %v1863 = vpop.permute.xlu0 %1862
      %1864 = vrot.lane.b32.xlu0 %v1659, 8
      %v1865 = vpop.permute.xlu0 %1864
      %1866 = vrot.lane.b32.xlu0 %v1715, 8
      %v1867 = vpop.permute.xlu0 %1866
      %1868 = vrot.lane.b32.xlu0 %v1661, 8
      %v1869 = vpop.permute.xlu0 %1868
      %1870 = vrot.lane.b32.xlu0 %v1716, 8
      %v1871 = vpop.permute.xlu0 %1870
      %1872 = vrot.lane.b32.xlu0 %v1663, 8
      %v1873 = vpop.permute.xlu0 %1872
      %1874 = vrot.lane.b32.xlu0 %v1717, 8
      %v1875 = vpop.permute.xlu0 %1874
      %1876 = vrot.lane.b32.xlu0 %v1665, 8
      %v1877 = vpop.permute.xlu0 %1876
      %1878 = vrot.lane.b32.xlu0 %v1718, 8
      %v1879 = vpop.permute.xlu0 %1878
      %1880 = vrot.lane.b32.xlu0 %v1667, 8
      %v1881 = vpop.permute.xlu0 %1880
      %1882 = vrot.lane.b32.xlu0 %v1719, 8
      %v1883 = vpop.permute.xlu0 %1882
      %1884 = vrot.lane.b32.xlu0 %v1669, 8
      %v1885 = vpop.permute.xlu0 %1884
      %1886 = vrot.lane.b32.xlu0 %v1720, 8
      %v1887 = vpop.permute.xlu0 %1886
      %1888 = vrot.lane.b32.xlu0 %v1671, 8
      %v1889 = vpop.permute.xlu0 %1888
      %1890 = vrot.lane.b32.xlu0 %v1721, 8
      %v1891 = vpop.permute.xlu0 %1890
      %1892 = vrot.lane.b32.xlu0 %v1673, 8
      %v1893 = vpop.permute.xlu0 %1892
      %1894 = vrot.lane.b32.xlu0 %v1722, 8
      %v1895 = vpop.permute.xlu0 %1894
      %1896 = vrot.lane.b32.xlu0 %v1675, 8
      %v1897 = vpop.permute.xlu0 %1896
      %1898 = vrot.lane.b32.xlu0 %v1723, 8
      %v1899 = vpop.permute.xlu0 %1898
      %v1932 = vsel %vm653, %v1628, %v1725
      %v1933 = vsel %vm653, %v1550, %v1727
      %v1934 = vsel %vm653, %v1629, %v1729
      %v1935 = vsel %vm653, %v1553, %v1731
      %v1936 = vsel %vm653, %v1630, %v1733
      %v1937 = vsel %vm653, %v1556, %v1735
      %v1938 = vsel %vm653, %v1631, %v1737
      %v1939 = vsel %vm653, %v1559, %v1739
      %v1940 = vsel %vm653, %v1632, %v1741
      %v1941 = vsel %vm653, %v1562, %v1743
      %v1942 = vsel %vm653, %v1633, %v1745
      %v1943 = vsel %vm653, %v1565, %v1747
      %v1944 = vsel %vm653, %v1634, %v1749
      %v1945 = vsel %vm653, %v1568, %v1751
      %v1946 = vsel %vm653, %v1635, %v1753
      %v1947 = vsel %vm653, %v1571, %v1755
      %v1948 = vsel %vm653, %v1636, %v1757
      %v1949 = vsel %vm653, %v1574, %v1759
      %v1950 = vsel %vm653, %v1637, %v1761
      %v1951 = vsel %vm653, %v1577, %v1763
      %v1952 = vsel %vm653, %v1638, %v1765
      %v1953 = vsel %vm653, %v1580, %v1767
      %v1954 = vsel %vm653, %v1639, %v1769
      %v1955 = vsel %vm653, %v1583, %v1771
      %v1956 = vsel %vm653, %v1640, %v1773
      %v1957 = vsel %vm653, %v1586, %v1775
      %v1958 = vsel %vm653, %v1641, %v1777
      %v1959 = vsel %vm653, %v1589, %v1779
      %v1960 = vsel %vm653, %v1642, %v1781
      %v1961 = vsel %vm653, %v1592, %v1783
      %v1962 = vsel %vm653, %v1643, %v1785
      %v1963 = vsel %vm653, %v1595, %v1787
      %v1964 = vsel %vm686, %v1932, %v1837
      %v1965 = vsel %vm686, %v1933, %v1839
      %v1966 = vsel %vm686, %v1934, %v1841
      %v1967 = vsel %vm686, %v1935, %v1843
      %v1968 = vsel %vm686, %v1936, %v1845
      %v1969 = vsel %vm686, %v1937, %v1847
      %v1970 = vsel %vm686, %v1938, %v1849
      %v1971 = vsel %vm686, %v1939, %v1851
      %v1972 = vsel %vm686, %v1940, %v1853
      %v1973 = vsel %vm686, %v1941, %v1855
      %v1974 = vsel %vm686, %v1942, %v1857
      %v1975 = vsel %vm686, %v1943, %v1859
      %v1976 = vsel %vm686, %v1944, %v1861
      %v1977 = vsel %vm686, %v1945, %v1863
      %v1978 = vsel %vm686, %v1946, %v1865
      %v1979 = vsel %vm686, %v1947, %v1867
      %v1980 = vsel %vm686, %v1948, %v1869
      %v1981 = vsel %vm686, %v1949, %v1871
      %v1982 = vsel %vm686, %v1950, %v1873
      %v1983 = vsel %vm686, %v1951, %v1875
      %v1984 = vsel %vm686, %v1952, %v1877
      %v1985 = vsel %vm686, %v1953, %v1879
      %v1986 = vsel %vm686, %v1954, %v1881
      %v1987 = vsel %vm686, %v1955, %v1883
      %v1988 = vsel %vm686, %v1956, %v1885
      %v1989 = vsel %vm686, %v1957, %v1887
      %v1990 = vsel %vm686, %v1958, %v1889
      %v1991 = vsel %vm686, %v1959, %v1891
      %v1992 = vsel %vm686, %v1960, %v1893
      %v1993 = vsel %vm686, %v1961, %v1895
      %v1994 = vsel %vm686, %v1962, %v1897
      %v1995 = vsel %vm686, %v1963, %v1899
      %v1996 = vld [vmem:[%s2] sm:$0xff]
      %v1997 = vld [vmem:[%s2 + $0x8] sm:$0xf]
      %s1998 = scalar_lea.vmem %s2, 16
      %v1999 = vld [vmem:[%s1998] sm:$0xff]
      %v2000 = vld [vmem:[%s1998 + $0x8] sm:$0xf]
      %v2002 = vsel %vm724, %v1966, 0
      %v2005 = vsel %vm724, %v1967, 0
      %v2008 = vsel %vm724, %v1964, 0
      %v2011 = vsel %vm724, %v1965, 0
      %v2014 = vsel %vm724, %v1968, 0
      %v2017 = vsel %vm724, %v1969, 0
      %v2020 = vsel %vm724, %v1970, 0
      %v2023 = vsel %vm724, %v1971, 0
      %v2026 = vsel %vm724, %v1972, 0
      %v2029 = vsel %vm724, %v1973, 0
      %v2032 = vsel %vm724, %v1974, 0
      %v2035 = vsel %vm724, %v1975, 0
      %v2038 = vsel %vm724, %v1976, 0
      %v2041 = vsel %vm724, %v1977, 0
      %v2044 = vsel %vm724, %v1978, 0
      %v2047 = vsel %vm724, %v1979, 0
      %v2050 = vsel %vm724, %v1980, 0
      %v2053 = vsel %vm724, %v1981, 0
      %v2056 = vsel %vm724, %v1982, 0
      %v2059 = vsel %vm724, %v1983, 0
      %v2062 = vsel %vm724, %v1984, 0
      %v2065 = vsel %vm724, %v1985, 0
      %v2068 = vsel %vm724, %v1986, 0
      %v2071 = vsel %vm724, %v1987, 0
      %v2074 = vsel %vm724, %v1988, 0
      %v2077 = vsel %vm724, %v1989, 0
      %v2080 = vsel %vm724, %v1990, 0
      %v2083 = vsel %vm724, %v1991, 0
      %v2086 = vsel %vm724, %v1992, 0
      %v2089 = vsel %vm724, %v1993, 0
      %v2092 = vsel %vm724, %v1994, 0
      %v2095 = vsel %vm724, %v1995, 0
      %v2098 = vsel %vm821, %v2000, 0
      %2100 = vmatpush.msra.mxu0 0.0
      %2101 = vmatpush.msra.mxu0 0.0
      %2102 = vmatpush.msra.mxu0 0.0
      %2103 = vmatpush.msra.mxu0 0.0
      %2104 = vmatpush.msra.mxu0 0.0
      %2105 = vmatpush.msra.mxu0 0.0
      %2106 = vmatpush.msra.mxu0 0.0
      %2107 = vmatpush.msra.mxu0 0.0
      %2108 = vmatpush.msra.mxu0 0.0
      %2109 = vmatpush.msra.mxu0 0.0
      %2110 = vmatpush.msra.mxu0 0.0
      %2111 = vmatpush.msra.mxu0 0.0
      %2112 = vmatpush.msra.mxu0 0.0
      %2113 = vmatpush.msra.mxu0 0.0
      %2114 = vmatpush.msra.mxu0 %v2098
      %2115 = vmatpush.msra.mxu0 %v1999
      %2116 = vmatmul.f32.gmra.mxu0 %v2002
      %v2117 = vpop.f32.mrf.mxu0
      %v2118 = vadd.f32 0.0, %v2117
      %2119 = vmatmul.f32.gmra.mxu0 %v2005
      %v2120 = vpop.f32.mrf.mxu0
      %v2121 = vadd.f32 0.0, %v2120
      %2122 = vmatmul.f32.gmra.mxu0 %v2008
      %v2123 = vpop.f32.mrf.mxu0
      %v2124 = vadd.f32 0.0, %v2123
      %2125 = vmatmul.f32.gmra.mxu0 %v2011
      %v2126 = vpop.f32.mrf.mxu0
      %v2127 = vadd.f32 0.0, %v2126
      %2128 = vmatmul.f32.gmra.mxu0 %v2014
      %v2129 = vpop.f32.mrf.mxu0
      %v2130 = vadd.f32 0.0, %v2129
      %2131 = vmatmul.f32.gmra.mxu0 %v2017
      %v2132 = vpop.f32.mrf.mxu0
      %v2133 = vadd.f32 0.0, %v2132
      %2134 = vmatmul.f32.gmra.mxu0 %v2020
      %v2135 = vpop.f32.mrf.mxu0
      %v2136 = vadd.f32 0.0, %v2135
      %2137 = vmatmul.f32.gmra.mxu0 %v2023
      %v2138 = vpop.f32.mrf.mxu0
      %v2139 = vadd.f32 0.0, %v2138
      %2140 = vmatmul.f32.gmra.mxu0 %v2026
      %v2141 = vpop.f32.mrf.mxu0
      %v2142 = vadd.f32 0.0, %v2141
      %2143 = vmatmul.f32.gmra.mxu0 %v2029
      %v2144 = vpop.f32.mrf.mxu0
      %v2145 = vadd.f32 0.0, %v2144
      %2146 = vmatmul.f32.gmra.mxu0 %v2032
      %v2147 = vpop.f32.mrf.mxu0
      %v2148 = vadd.f32 0.0, %v2147
      %2149 = vmatmul.f32.gmra.mxu0 %v2035
      %v2150 = vpop.f32.mrf.mxu0
      %v2151 = vadd.f32 0.0, %v2150
      %2152 = vmatmul.f32.gmra.mxu0 %v2038
      %v2153 = vpop.f32.mrf.mxu0
      %v2154 = vadd.f32 0.0, %v2153
      %2155 = vmatmul.f32.gmra.mxu0 %v2041
      %v2156 = vpop.f32.mrf.mxu0
      %v2157 = vadd.f32 0.0, %v2156
      %2158 = vmatmul.f32.gmra.mxu0 %v2044
      %v2159 = vpop.f32.mrf.mxu0
      %v2160 = vadd.f32 0.0, %v2159
      %2161 = vmatmul.f32.gmra.mxu0 %v2047
      %v2162 = vpop.f32.mrf.mxu0
      %v2163 = vadd.f32 0.0, %v2162
      %2164 = vmatmul.f32.gmra.mxu0 %v2050
      %v2165 = vpop.f32.mrf.mxu0
      %v2166 = vadd.f32 0.0, %v2165
      %2167 = vmatmul.f32.gmra.mxu0 %v2053
      %v2168 = vpop.f32.mrf.mxu0
      %v2169 = vadd.f32 0.0, %v2168
      %2170 = vmatmul.f32.gmra.mxu0 %v2056
      %v2171 = vpop.f32.mrf.mxu0
      %v2172 = vadd.f32 0.0, %v2171
      %2173 = vmatmul.f32.gmra.mxu0 %v2059
      %v2174 = vpop.f32.mrf.mxu0
      %v2175 = vadd.f32 0.0, %v2174
      %2176 = vmatmul.f32.gmra.mxu0 %v2062
      %v2177 = vpop.f32.mrf.mxu0
      %v2178 = vadd.f32 0.0, %v2177
      %2179 = vmatmul.f32.gmra.mxu0 %v2065
      %v2180 = vpop.f32.mrf.mxu0
      %v2181 = vadd.f32 0.0, %v2180
      %2182 = vmatmul.f32.gmra.mxu0 %v2068
      %v2183 = vpop.f32.mrf.mxu0
      %v2184 = vadd.f32 0.0, %v2183
      %2185 = vmatmul.f32.gmra.mxu0 %v2071
      %v2186 = vpop.f32.mrf.mxu0
      %v2187 = vadd.f32 0.0, %v2186
      %2188 = vmatmul.f32.gmra.mxu0 %v2074
      %v2189 = vpop.f32.mrf.mxu0
      %v2190 = vadd.f32 0.0, %v2189
      %2191 = vmatmul.f32.gmra.mxu0 %v2077
      %v2192 = vpop.f32.mrf.mxu0
      %v2193 = vadd.f32 0.0, %v2192
      %2194 = vmatmul.f32.gmra.mxu0 %v2080
      %v2195 = vpop.f32.mrf.mxu0
      %v2196 = vadd.f32 0.0, %v2195
      %2197 = vmatmul.f32.gmra.mxu0 %v2083
      %v2198 = vpop.f32.mrf.mxu0
      %v2199 = vadd.f32 0.0, %v2198
      %2200 = vmatmul.f32.gmra.mxu0 %v2086
      %v2201 = vpop.f32.mrf.mxu0
      %v2202 = vadd.f32 0.0, %v2201
      %2203 = vmatmul.f32.gmra.mxu0 %v2089
      %v2204 = vpop.f32.mrf.mxu0
      %v2205 = vadd.f32 0.0, %v2204
      %2206 = vmatmul.f32.gmra.mxu0 %v2092
      %v2207 = vpop.f32.mrf.mxu0
      %v2208 = vadd.f32 0.0, %v2207
      %2209 = vmatmul.f32.gmra.mxu0 %v2095
      %v2210 = vpop.f32.mrf.mxu0
      %v2211 = vadd.f32 0.0, %v2210
      %2212 = vdwg.mxu0
      %v2214 = vsel %vm821, %v1997, 0
      %2216 = vmatpush.msra.mxu0 0.0
      %2217 = vmatpush.msra.mxu0 0.0
      %2218 = vmatpush.msra.mxu0 0.0
      %2219 = vmatpush.msra.mxu0 0.0
      %2220 = vmatpush.msra.mxu0 0.0
      %2221 = vmatpush.msra.mxu0 0.0
      %2222 = vmatpush.msra.mxu0 0.0
      %2223 = vmatpush.msra.mxu0 0.0
      %2224 = vmatpush.msra.mxu0 0.0
      %2225 = vmatpush.msra.mxu0 0.0
      %2226 = vmatpush.msra.mxu0 0.0
      %2227 = vmatpush.msra.mxu0 0.0
      %2228 = vmatpush.msra.mxu0 0.0
      %2229 = vmatpush.msra.mxu0 0.0
      %2230 = vmatpush.msra.mxu0 %v2214
      %2231 = vmatpush.msra.mxu0 %v1996
      %2232 = vmatmul.f32.gmra.mxu0 %v2008
      %v2233 = vpop.f32.mrf.mxu0
      %v2234 = vadd.f32 %v2118, %v2233
      %2235 = vmatmul.f32.gmra.mxu0 %v2011
      %v2236 = vpop.f32.mrf.mxu0
      %v2237 = vadd.f32 %v2121, %v2236
      %2238 = vmatmul.f32.gmra.mxu0 %v2002
      %v2239 = vpop.f32.mrf.mxu0
      %v2240 = vadd.f32 %v2124, %v2239
      %2241 = vmatmul.f32.gmra.mxu0 %v2005
      %v2242 = vpop.f32.mrf.mxu0
      %v2243 = vadd.f32 %v2127, %v2242
      %2244 = vmatmul.f32.gmra.mxu0 %v2008
      %v2245 = vpop.f32.mrf.mxu0
      %v2246 = vadd.f32 %v2130, %v2245
      %2247 = vmatmul.f32.gmra.mxu0 %v2011
      %v2248 = vpop.f32.mrf.mxu0
      %v2249 = vadd.f32 %v2133, %v2248
      %2250 = vmatmul.f32.gmra.mxu0 %v2014
      %v2251 = vpop.f32.mrf.mxu0
      %v2252 = vadd.f32 %v2136, %v2251
      %2253 = vmatmul.f32.gmra.mxu0 %v2017
      %v2254 = vpop.f32.mrf.mxu0
      %v2255 = vadd.f32 %v2139, %v2254
      %2256 = vmatmul.f32.gmra.mxu0 %v2020
      %v2257 = vpop.f32.mrf.mxu0
      %v2258 = vadd.f32 %v2142, %v2257
      %2259 = vmatmul.f32.gmra.mxu0 %v2023
      %v2260 = vpop.f32.mrf.mxu0
      %v2261 = vadd.f32 %v2145, %v2260
      %2262 = vmatmul.f32.gmra.mxu0 %v2026
      %v2263 = vpop.f32.mrf.mxu0
      %v2264 = vadd.f32 %v2148, %v2263
      %2265 = vmatmul.f32.gmra.mxu0 %v2029
      %v2266 = vpop.f32.mrf.mxu0
      %v2267 = vadd.f32 %v2151, %v2266
      %2268 = vmatmul.f32.gmra.mxu0 %v2032
      %v2269 = vpop.f32.mrf.mxu0
      %v2270 = vadd.f32 %v2154, %v2269
      %2271 = vmatmul.f32.gmra.mxu0 %v2035
      %v2272 = vpop.f32.mrf.mxu0
      %v2273 = vadd.f32 %v2157, %v2272
      %2274 = vmatmul.f32.gmra.mxu0 %v2038
      %v2275 = vpop.f32.mrf.mxu0
      %v2276 = vadd.f32 %v2160, %v2275
      %2277 = vmatmul.f32.gmra.mxu0 %v2041
      %v2278 = vpop.f32.mrf.mxu0
      %v2279 = vadd.f32 %v2163, %v2278
      %2280 = vmatmul.f32.gmra.mxu0 %v2044
      %v2281 = vpop.f32.mrf.mxu0
      %v2282 = vadd.f32 %v2166, %v2281
      %2283 = vmatmul.f32.gmra.mxu0 %v2047
      %v2284 = vpop.f32.mrf.mxu0
      %v2285 = vadd.f32 %v2169, %v2284
      %2286 = vmatmul.f32.gmra.mxu0 %v2050
      %v2287 = vpop.f32.mrf.mxu0
      %v2288 = vadd.f32 %v2172, %v2287
      %2289 = vmatmul.f32.gmra.mxu0 %v2053
      %v2290 = vpop.f32.mrf.mxu0
      %v2291 = vadd.f32 %v2175, %v2290
      %2292 = vmatmul.f32.gmra.mxu0 %v2056
      %v2293 = vpop.f32.mrf.mxu0
      %v2294 = vadd.f32 %v2178, %v2293
      %2295 = vmatmul.f32.gmra.mxu0 %v2059
      %v2296 = vpop.f32.mrf.mxu0
      %v2297 = vadd.f32 %v2181, %v2296
      %2298 = vmatmul.f32.gmra.mxu0 %v2062
      %v2299 = vpop.f32.mrf.mxu0
      %v2300 = vadd.f32 %v2184, %v2299
      %2301 = vmatmul.f32.gmra.mxu0 %v2065
      %v2302 = vpop.f32.mrf.mxu0
      %v2303 = vadd.f32 %v2187, %v2302
      %2304 = vmatmul.f32.gmra.mxu0 %v2068
      %v2305 = vpop.f32.mrf.mxu0
      %v2306 = vadd.f32 %v2190, %v2305
      %2307 = vmatmul.f32.gmra.mxu0 %v2071
      %v2308 = vpop.f32.mrf.mxu0
      %v2309 = vadd.f32 %v2193, %v2308
      %2310 = vmatmul.f32.gmra.mxu0 %v2074
      %v2311 = vpop.f32.mrf.mxu0
      %v2312 = vadd.f32 %v2196, %v2311
      %2313 = vmatmul.f32.gmra.mxu0 %v2077
      %v2314 = vpop.f32.mrf.mxu0
      %v2315 = vadd.f32 %v2199, %v2314
      %2316 = vmatmul.f32.gmra.mxu0 %v2080
      %v2317 = vpop.f32.mrf.mxu0
      %v2318 = vadd.f32 %v2202, %v2317
      %2319 = vmatmul.f32.gmra.mxu0 %v2083
      %v2320 = vpop.f32.mrf.mxu0
      %v2321 = vadd.f32 %v2205, %v2320
      %2322 = vmatmul.f32.gmra.mxu0 %v2086
      %v2323 = vpop.f32.mrf.mxu0
      %v2324 = vadd.f32 %v2208, %v2323
      %2325 = vmatmul.f32.gmra.mxu0 %v2089
      %v2326 = vpop.f32.mrf.mxu0
      %v2327 = vadd.f32 %v2211, %v2326
      %2328 = vdwg.mxu0
      %s2329 = scalar_lea.vmem %s2, 32
      %v2330 = vld [vmem:[%s2329] sm:$0xff]
      %v2331 = vld [vmem:[%s2329 + $0x8] sm:$0xf]
      %v2333 = vsel %vm821, %v2331, 0
      %2335 = vmatpush.msra.mxu0 0.0
      %2336 = vmatpush.msra.mxu0 0.0
      %2337 = vmatpush.msra.mxu0 0.0
      %2338 = vmatpush.msra.mxu0 0.0
      %2339 = vmatpush.msra.mxu0 0.0
      %2340 = vmatpush.msra.mxu0 0.0
      %2341 = vmatpush.msra.mxu0 0.0
      %2342 = vmatpush.msra.mxu0 0.0
      %2343 = vmatpush.msra.mxu0 0.0
      %2344 = vmatpush.msra.mxu0 0.0
      %2345 = vmatpush.msra.mxu0 0.0
      %2346 = vmatpush.msra.mxu0 0.0
      %2347 = vmatpush.msra.mxu0 0.0
      %2348 = vmatpush.msra.mxu0 0.0
      %2349 = vmatpush.msra.mxu0 %v2333
      %2350 = vmatpush.msra.mxu0 %v2330
      %2351 = vmatmul.f32.gmra.mxu0 %v2008
      %v2352 = vpop.f32.mrf.mxu0
      %v2353 = vadd.f32 0.0, %v2352
      %2354 = vmatmul.f32.gmra.mxu0 %v2011
      %v2355 = vpop.f32.mrf.mxu0
      %v2356 = vadd.f32 0.0, %v2355
      %2357 = vmatmul.f32.gmra.mxu0 %v2014
      %v2358 = vpop.f32.mrf.mxu0
      %v2359 = vadd.f32 0.0, %v2358
      %2360 = vmatmul.f32.gmra.mxu0 %v2017
      %v2361 = vpop.f32.mrf.mxu0
      %v2362 = vadd.f32 0.0, %v2361
      %2363 = vmatmul.f32.gmra.mxu0 %v2020
      %v2364 = vpop.f32.mrf.mxu0
      %v2365 = vadd.f32 0.0, %v2364
      %2366 = vmatmul.f32.gmra.mxu0 %v2023
      %v2367 = vpop.f32.mrf.mxu0
      %v2368 = vadd.f32 0.0, %v2367
      %2369 = vmatmul.f32.gmra.mxu0 %v2026
      %v2370 = vpop.f32.mrf.mxu0
      %v2371 = vadd.f32 0.0, %v2370
      %2372 = vmatmul.f32.gmra.mxu0 %v2029
      %v2373 = vpop.f32.mrf.mxu0
      %v2374 = vadd.f32 0.0, %v2373
      %2375 = vmatmul.f32.gmra.mxu0 %v2032
      %v2376 = vpop.f32.mrf.mxu0
      %v2377 = vadd.f32 0.0, %v2376
      %2378 = vmatmul.f32.gmra.mxu0 %v2035
      %v2379 = vpop.f32.mrf.mxu0
      %v2380 = vadd.f32 0.0, %v2379
      %2381 = vmatmul.f32.gmra.mxu0 %v2038
      %v2382 = vpop.f32.mrf.mxu0
      %v2383 = vadd.f32 0.0, %v2382
      %2384 = vmatmul.f32.gmra.mxu0 %v2041
      %v2385 = vpop.f32.mrf.mxu0
      %v2386 = vadd.f32 0.0, %v2385
      %2387 = vmatmul.f32.gmra.mxu0 %v2044
      %v2388 = vpop.f32.mrf.mxu0
      %v2389 = vadd.f32 0.0, %v2388
      %2390 = vmatmul.f32.gmra.mxu0 %v2047
      %v2391 = vpop.f32.mrf.mxu0
      %v2392 = vadd.f32 0.0, %v2391
      %2393 = vmatmul.f32.gmra.mxu0 %v2050
      %v2394 = vpop.f32.mrf.mxu0
      %v2395 = vadd.f32 0.0, %v2394
      %2396 = vmatmul.f32.gmra.mxu0 %v2053
      %v2397 = vpop.f32.mrf.mxu0
      %v2398 = vadd.f32 0.0, %v2397
      %2399 = vmatmul.f32.gmra.mxu0 %v2056
      %v2400 = vpop.f32.mrf.mxu0
      %v2401 = vadd.f32 0.0, %v2400
      %2402 = vmatmul.f32.gmra.mxu0 %v2059
      %v2403 = vpop.f32.mrf.mxu0
      %v2404 = vadd.f32 0.0, %v2403
      %2405 = vmatmul.f32.gmra.mxu0 %v2062
      %v2406 = vpop.f32.mrf.mxu0
      %v2407 = vadd.f32 0.0, %v2406
      %2408 = vmatmul.f32.gmra.mxu0 %v2065
      %v2409 = vpop.f32.mrf.mxu0
      %v2410 = vadd.f32 0.0, %v2409
      %2411 = vmatmul.f32.gmra.mxu0 %v2068
      %v2412 = vpop.f32.mrf.mxu0
      %v2413 = vadd.f32 0.0, %v2412
      %2414 = vmatmul.f32.gmra.mxu0 %v2071
      %v2415 = vpop.f32.mrf.mxu0
      %v2416 = vadd.f32 0.0, %v2415
      %2417 = vmatmul.f32.gmra.mxu0 %v2074
      %v2418 = vpop.f32.mrf.mxu0
      %v2419 = vadd.f32 0.0, %v2418
      %2420 = vmatmul.f32.gmra.mxu0 %v2077
      %v2421 = vpop.f32.mrf.mxu0
      %v2422 = vadd.f32 0.0, %v2421
      %2423 = vmatmul.f32.gmra.mxu0 %v2080
      %v2424 = vpop.f32.mrf.mxu0
      %v2425 = vadd.f32 0.0, %v2424
      %2426 = vmatmul.f32.gmra.mxu0 %v2083
      %v2427 = vpop.f32.mrf.mxu0
      %v2428 = vadd.f32 0.0, %v2427
      %2429 = vmatmul.f32.gmra.mxu0 %v2086
      %v2430 = vpop.f32.mrf.mxu0
      %v2431 = vadd.f32 0.0, %v2430
      %2432 = vmatmul.f32.gmra.mxu0 %v2089
      %v2433 = vpop.f32.mrf.mxu0
      %v2434 = vadd.f32 0.0, %v2433
      %2435 = vmatmul.f32.gmra.mxu0 %v2092
      %v2436 = vpop.f32.mrf.mxu0
      %v2437 = vadd.f32 0.0, %v2436
      %2438 = vmatmul.f32.gmra.mxu0 %v2095
      %v2439 = vpop.f32.mrf.mxu0
      %v2440 = vadd.f32 0.0, %v2439
      %2441 = vmatmul.f32.gmra.mxu0 %v2086
      %v2442 = vpop.f32.mrf.mxu0
      %v2443 = vadd.f32 0.0, %v2442
      %2444 = vmatmul.f32.gmra.mxu0 %v2089
      %v2445 = vpop.f32.mrf.mxu0
      %v2446 = vadd.f32 0.0, %v2445
      %2447 = vdwg.mxu0
      %v2448 = vadd.f32 %v2234, %v2353
      %v2449 = vadd.f32 %v2237, %v2356
      %v2450 = vadd.f32 %v2240, %v2359
      %v2451 = vadd.f32 %v2243, %v2362
      %v2452 = vadd.f32 %v2246, %v2365
      %v2453 = vadd.f32 %v2249, %v2368
      %v2454 = vadd.f32 %v2252, %v2371
      %v2455 = vadd.f32 %v2255, %v2374
      %v2456 = vadd.f32 %v2258, %v2377
      %v2457 = vadd.f32 %v2261, %v2380
      %v2458 = vadd.f32 %v2264, %v2383
      %v2459 = vadd.f32 %v2267, %v2386
      %v2460 = vadd.f32 %v2270, %v2389
      %v2461 = vadd.f32 %v2273, %v2392
      %v2462 = vadd.f32 %v2276, %v2395
      %v2463 = vadd.f32 %v2279, %v2398
      %v2464 = vadd.f32 %v2282, %v2401
      %v2465 = vadd.f32 %v2285, %v2404
      %v2466 = vadd.f32 %v2288, %v2407
      %v2467 = vadd.f32 %v2291, %v2410
      %v2468 = vadd.f32 %v2294, %v2413
      %v2469 = vadd.f32 %v2297, %v2416
      %v2470 = vadd.f32 %v2300, %v2419
      %v2471 = vadd.f32 %v2303, %v2422
      %v2472 = vadd.f32 %v2306, %v2425
      %v2473 = vadd.f32 %v2309, %v2428
      %v2474 = vadd.f32 %v2312, %v2431
      %v2475 = vadd.f32 %v2315, %v2434
      %v2476 = vadd.f32 %v2318, %v2437
      %v2477 = vadd.f32 %v2321, %v2440
      %v2478 = vadd.f32 %v2324, %v2443
      %v2479 = vadd.f32 %v2327, %v2446
      %v2480 = vsel %vm653, %v2448, 0.0
      %v2481 = vsel %vm653, %v2449, 0.0
      %v2482 = vadd.f32 %v2480, %v2481
      %v2483 = vsel %vm653, %v2450, 0.0
      %v2484 = vadd.f32 %v2482, %v2483
      %v2485 = vsel %vm653, %v2451, 0.0
      %v2486 = vadd.f32 %v2484, %v2485
      %v2487 = vsel %vm653, %v2452, 0.0
      %v2488 = vadd.f32 %v2486, %v2487
      %v2489 = vsel %vm653, %v2453, 0.0
      %v2490 = vadd.f32 %v2488, %v2489
      %v2491 = vsel %vm653, %v2454, 0.0
      %v2492 = vadd.f32 %v2490, %v2491
      %v2493 = vsel %vm653, %v2455, 0.0
      %v2494 = vadd.f32 %v2492, %v2493
      %v2495 = vsel %vm653, %v2456, 0.0
      %v2496 = vadd.f32 %v2494, %v2495
      %v2497 = vsel %vm653, %v2457, 0.0
      %v2498 = vadd.f32 %v2496, %v2497
      %v2499 = vsel %vm653, %v2458, 0.0
      %v2500 = vadd.f32 %v2498, %v2499
      %v2501 = vsel %vm653, %v2459, 0.0
      %v2502 = vadd.f32 %v2500, %v2501
      %v2503 = vsel %vm653, %v2460, 0.0
      %v2504 = vadd.f32 %v2502, %v2503
      %v2505 = vsel %vm653, %v2461, 0.0
      %v2506 = vadd.f32 %v2504, %v2505
      %v2507 = vsel %vm653, %v2462, 0.0
      %v2508 = vadd.f32 %v2506, %v2507
      %v2509 = vsel %vm653, %v2463, 0.0
      %v2510 = vadd.f32 %v2508, %v2509
      %v2511 = vsel %vm653, %v2464, 0.0
      %v2512 = vadd.f32 %v2510, %v2511
      %v2513 = vsel %vm653, %v2465, 0.0
      %v2514 = vadd.f32 %v2512, %v2513
      %v2515 = vsel %vm653, %v2466, 0.0
      %v2516 = vadd.f32 %v2514, %v2515
      %v2517 = vsel %vm653, %v2467, 0.0
      %v2518 = vadd.f32 %v2516, %v2517
      %v2519 = vsel %vm653, %v2468, 0.0
      %v2520 = vadd.f32 %v2518, %v2519
      %v2521 = vsel %vm653, %v2469, 0.0
      %v2522 = vadd.f32 %v2520, %v2521
      %v2523 = vsel %vm653, %v2470, 0.0
      %v2524 = vadd.f32 %v2522, %v2523
      %v2525 = vsel %vm653, %v2471, 0.0
      %v2526 = vadd.f32 %v2524, %v2525
      %v2527 = vsel %vm653, %v2472, 0.0
      %v2528 = vadd.f32 %v2526, %v2527
      %v2529 = vsel %vm653, %v2473, 0.0
      %v2530 = vadd.f32 %v2528, %v2529
      %v2531 = vsel %vm653, %v2474, 0.0
      %v2532 = vadd.f32 %v2530, %v2531
      %v2533 = vsel %vm653, %v2475, 0.0
      %v2534 = vadd.f32 %v2532, %v2533
      %v2535 = vsel %vm653, %v2476, 0.0
      %v2536 = vadd.f32 %v2534, %v2535
      %v2537 = vsel %vm653, %v2477, 0.0
      %v2538 = vadd.f32 %v2536, %v2537
      %v2539 = vsel %vm653, %v2478, 0.0
      %v2540 = vadd.f32 %v2538, %v2539
      %v2541 = vsel %vm653, %v2479, 0.0
      %v2542 = vadd.f32 %v2540, %v2541
      %v2543 = vrot.slane %v2542, 4
      %v2544 = vadd.f32 %v2542, %v2543
      %v2545 = vrot.slane %v2544, 2
      %v2546 = vadd.f32 %v2544, %v2545
      %v2547 = vrot.slane %v2546, 1
      %v2548 = vadd.f32 %v2546, %v2547
      %v2549 = vmul.f32 %v2548, 0.00390625
      %v2550 = vsub.f32 %v2448, %v2549
      %v2551 = vsub.f32 %v2449, %v2549
      %v2552 = vsub.f32 %v2450, %v2549
      %v2553 = vsub.f32 %v2451, %v2549
      %v2554 = vsub.f32 %v2452, %v2549
      %v2555 = vsub.f32 %v2453, %v2549
      %v2556 = vsub.f32 %v2454, %v2549
      %v2557 = vsub.f32 %v2455, %v2549
      %v2558 = vsub.f32 %v2456, %v2549
      %v2559 = vsub.f32 %v2457, %v2549
      %v2560 = vsub.f32 %v2458, %v2549
      %v2561 = vsub.f32 %v2459, %v2549
      %v2562 = vsub.f32 %v2460, %v2549
      %v2563 = vsub.f32 %v2461, %v2549
      %v2564 = vsub.f32 %v2462, %v2549
      %v2565 = vsub.f32 %v2463, %v2549
      %v2566 = vsub.f32 %v2464, %v2549
      %v2567 = vsub.f32 %v2465, %v2549
      %v2568 = vsub.f32 %v2466, %v2549
      %v2569 = vsub.f32 %v2467, %v2549
      %v2570 = vsub.f32 %v2468, %v2549
      %v2571 = vsub.f32 %v2469, %v2549
      %v2572 = vsub.f32 %v2470, %v2549
      %v2573 = vsub.f32 %v2471, %v2549
      %v2574 = vsub.f32 %v2472, %v2549
      %v2575 = vsub.f32 %v2473, %v2549
      %v2576 = vsub.f32 %v2474, %v2549
      %v2577 = vsub.f32 %v2475, %v2549
      %v2578 = vsub.f32 %v2476, %v2549
      %v2579 = vsub.f32 %v2477, %v2549
      %v2580 = vsub.f32 %v2478, %v2549
      %v2581 = vsub.f32 %v2479, %v2549
      %v2582 = vmul.f32 %v2550, %v2550
      %v2583 = vmul.f32 %v2551, %v2551
      %v2584 = vmul.f32 %v2552, %v2552
      %v2585 = vmul.f32 %v2553, %v2553
      %v2586 = vmul.f32 %v2554, %v2554
      %v2587 = vmul.f32 %v2555, %v2555
      %v2588 = vmul.f32 %v2556, %v2556
      %v2589 = vmul.f32 %v2557, %v2557
      %v2590 = vmul.f32 %v2558, %v2558
      %v2591 = vmul.f32 %v2559, %v2559
      %v2592 = vmul.f32 %v2560, %v2560
      %v2593 = vmul.f32 %v2561, %v2561
      %v2594 = vmul.f32 %v2562, %v2562
      %v2595 = vmul.f32 %v2563, %v2563
      %v2596 = vmul.f32 %v2564, %v2564
      %v2597 = vmul.f32 %v2565, %v2565
      %v2598 = vmul.f32 %v2566, %v2566
      %v2599 = vmul.f32 %v2567, %v2567
      %v2600 = vmul.f32 %v2568, %v2568
      %v2601 = vmul.f32 %v2569, %v2569
      %v2602 = vmul.f32 %v2570, %v2570
      %v2603 = vmul.f32 %v2571, %v2571
      %v2604 = vmul.f32 %v2572, %v2572
      %v2605 = vmul.f32 %v2573, %v2573
      %v2606 = vmul.f32 %v2574, %v2574
      %v2607 = vmul.f32 %v2575, %v2575
      %v2608 = vmul.f32 %v2576, %v2576
      %v2609 = vmul.f32 %v2577, %v2577
      %v2610 = vmul.f32 %v2578, %v2578
      %v2611 = vmul.f32 %v2579, %v2579
      %v2612 = vmul.f32 %v2580, %v2580
      %v2613 = vmul.f32 %v2581, %v2581
      %v2614 = vsel %vm653, %v2582, 0.0
      %v2615 = vsel %vm653, %v2583, 0.0
      %v2616 = vadd.f32 %v2614, %v2615
      %v2617 = vsel %vm653, %v2584, 0.0
      %v2618 = vadd.f32 %v2616, %v2617
      %v2619 = vsel %vm653, %v2585, 0.0
      %v2620 = vadd.f32 %v2618, %v2619
      %v2621 = vsel %vm653, %v2586, 0.0
      %v2622 = vadd.f32 %v2620, %v2621
      %v2623 = vsel %vm653, %v2587, 0.0
      %v2624 = vadd.f32 %v2622, %v2623
      %v2625 = vsel %vm653, %v2588, 0.0
      %v2626 = vadd.f32 %v2624, %v2625
      %v2627 = vsel %vm653, %v2589, 0.0
      %v2628 = vadd.f32 %v2626, %v2627
      %v2629 = vsel %vm653, %v2590, 0.0
      %v2630 = vadd.f32 %v2628, %v2629
      %v2631 = vsel %vm653, %v2591, 0.0
      %v2632 = vadd.f32 %v2630, %v2631
      %v2633 = vsel %vm653, %v2592, 0.0
      %v2634 = vadd.f32 %v2632, %v2633
      %v2635 = vsel %vm653, %v2593, 0.0
      %v2636 = vadd.f32 %v2634, %v2635
      %v2637 = vsel %vm653, %v2594, 0.0
      %v2638 = vadd.f32 %v2636, %v2637
      %v2639 = vsel %vm653, %v2595, 0.0
      %v2640 = vadd.f32 %v2638, %v2639
      %v2641 = vsel %vm653, %v2596, 0.0
      %v2642 = vadd.f32 %v2640, %v2641
      %v2643 = vsel %vm653, %v2597, 0.0
      %v2644 = vadd.f32 %v2642, %v2643
      %v2645 = vsel %vm653, %v2598, 0.0
      %v2646 = vadd.f32 %v2644, %v2645
      %v2647 = vsel %vm653, %v2599, 0.0
      %v2648 = vadd.f32 %v2646, %v2647
      %v2649 = vsel %vm653, %v2600, 0.0
      %v2650 = vadd.f32 %v2648, %v2649
      %v2651 = vsel %vm653, %v2601, 0.0
      %v2652 = vadd.f32 %v2650, %v2651
      %v2653 = vsel %vm653, %v2602, 0.0
      %v2654 = vadd.f32 %v2652, %v2653
      %v2655 = vsel %vm653, %v2603, 0.0
      %v2656 = vadd.f32 %v2654, %v2655
      %v2657 = vsel %vm653, %v2604, 0.0
      %v2658 = vadd.f32 %v2656, %v2657
      %v2659 = vsel %vm653, %v2605, 0.0
      %v2660 = vadd.f32 %v2658, %v2659
      %v2661 = vsel %vm653, %v2606, 0.0
      %v2662 = vadd.f32 %v2660, %v2661
      %v2663 = vsel %vm653, %v2607, 0.0
      %v2664 = vadd.f32 %v2662, %v2663
      %v2665 = vsel %vm653, %v2608, 0.0
      %v2666 = vadd.f32 %v2664, %v2665
      %v2667 = vsel %vm653, %v2609, 0.0
      %v2668 = vadd.f32 %v2666, %v2667
      %v2669 = vsel %vm653, %v2610, 0.0
      %v2670 = vadd.f32 %v2668, %v2669
      %v2671 = vsel %vm653, %v2611, 0.0
      %v2672 = vadd.f32 %v2670, %v2671
      %v2673 = vsel %vm653, %v2612, 0.0
      %v2674 = vadd.f32 %v2672, %v2673
      %v2675 = vsel %vm653, %v2613, 0.0
      %v2676 = vadd.f32 %v2674, %v2675
      %v2677 = vrot.slane %v2676, 4
      %v2678 = vadd.f32 %v2676, %v2677
      %v2679 = vrot.slane %v2678, 2
      %v2680 = vadd.f32 %v2678, %v2679
      %v2681 = vrot.slane %v2680, 1
      %v2682 = vadd.f32 %v2680, %v2681
      %v2683 = vmul.f32 %v2682, 0.00390625
      %v2684 = vadd.f32 %v2683, 1e-05
      %v2685 = vrsqrt.pop %v2684
      %v2686 = vmul.f32 %v2685, %v2684
      %v2687 = vmul.f32 %v2686, %v2685
      %v2688 = vmul.f32 0.5, %v2687
      %v2689 = vsub.f32 1.5, %v2688
      %v2690 = vmul.f32 %v2685, %v2689
      %vm2691 = vweird.f32 %v2684
      %vm2692 = vweird.f32 %v2685
      %vm2693 = vmor %vm2691, %vm2692
      %v2694 = vsel %vm2693, %v2685, %v2690
      %v2695 = vmul.f32 %v2550, %v2694
      %v2696 = vmul.f32 %v2551, %v2694
      %v2697 = vmul.f32 %v2552, %v2694
      %v2698 = vmul.f32 %v2553, %v2694
      %v2699 = vmul.f32 %v2554, %v2694
      %v2700 = vmul.f32 %v2555, %v2694
      %v2701 = vmul.f32 %v2556, %v2694
      %v2702 = vmul.f32 %v2557, %v2694
      %v2703 = vmul.f32 %v2558, %v2694
      %v2704 = vmul.f32 %v2559, %v2694
      %v2705 = vmul.f32 %v2560, %v2694
      %v2706 = vmul.f32 %v2561, %v2694
      %v2707 = vmul.f32 %v2562, %v2694
      %v2708 = vmul.f32 %v2563, %v2694
      %v2709 = vmul.f32 %v2564, %v2694
      %v2710 = vmul.f32 %v2565, %v2694
      %v2711 = vmul.f32 %v2566, %v2694
      %v2712 = vmul.f32 %v2567, %v2694
      %v2713 = vmul.f32 %v2568, %v2694
      %v2714 = vmul.f32 %v2569, %v2694
      %v2715 = vmul.f32 %v2570, %v2694
      %v2716 = vmul.f32 %v2571, %v2694
      %v2717 = vmul.f32 %v2572, %v2694
      %v2718 = vmul.f32 %v2573, %v2694
      %v2719 = vmul.f32 %v2574, %v2694
      %v2720 = vmul.f32 %v2575, %v2694
      %v2721 = vmul.f32 %v2576, %v2694
      %v2722 = vmul.f32 %v2577, %v2694
      %v2723 = vmul.f32 %v2578, %v2694
      %v2724 = vmul.f32 %v2579, %v2694
      %v2725 = vmul.f32 %v2580, %v2694
      %v2726 = vmul.f32 %v2581, %v2694
      %v2727 = vld [vmem:[%s165] sm:$0xff]
      %v2728 = vld [vmem:[%s165 + $0x8] sm:$0xff]
      %v2729 = vld [vmem:[%s165 + $0x10] sm:$0xff]
      %v2730 = vld [vmem:[%s165 + $0x18] sm:$0xff]
      %v2731 = vld [vmem:[%s165 + $0x20] sm:$0xff]
      %v2732 = vld [vmem:[%s165 + $0x28] sm:$0xff]
      %v2733 = vld [vmem:[%s165 + $0x30] sm:$0xff]
      %v2734 = vld [vmem:[%s165 + $0x38] sm:$0xff]
      %v2735 = vld [vmem:[%s165 + $0x40] sm:$0xff]
      %v2736 = vld [vmem:[%s165 + $0x48] sm:$0xff]
      %v2737 = vld [vmem:[%s165 + $0x50] sm:$0xff]
      %v2738 = vld [vmem:[%s165 + $0x58] sm:$0xff]
      %v2739 = vld [vmem:[%s165 + $0x60] sm:$0xff]
      %v2740 = vld [vmem:[%s165 + $0x68] sm:$0xff]
      %v2741 = vld [vmem:[%s165 + $0x70] sm:$0xff]
      %v2742 = vld [vmem:[%s165 + $0x78] sm:$0xff]
      %v2743 = vld [vmem:[%s165 + $0x80] sm:$0xff]
      %v2744 = vld [vmem:[%s165 + $0x88] sm:$0xff]
      %v2745 = vld [vmem:[%s165 + $0x90] sm:$0xff]
      %v2746 = vld [vmem:[%s165 + $0x98] sm:$0xff]
      %v2747 = vld [vmem:[%s165 + $0xa0] sm:$0xff]
      %v2748 = vld [vmem:[%s165 + $0xa8] sm:$0xff]
      %v2749 = vld [vmem:[%s165 + $0xb0] sm:$0xff]
      %v2750 = vld [vmem:[%s165 + $0xb8] sm:$0xff]
      %v2751 = vld [vmem:[%s165 + $0xc0] sm:$0xff]
      %v2752 = vld [vmem:[%s165 + $0xc8] sm:$0xff]
      %v2753 = vld [vmem:[%s165 + $0xd0] sm:$0xff]
      %v2754 = vld [vmem:[%s165 + $0xd8] sm:$0xff]
      %v2755 = vld [vmem:[%s165 + $0xe0] sm:$0xff]
      %v2756 = vld [vmem:[%s165 + $0xe8] sm:$0xff]
      %v2757 = vld [vmem:[%s165 + $0xf0] sm:$0xff]
      %v2758 = vld [vmem:[%s165 + $0xf8] sm:$0xff]
      %v2759 = vadd.f32 %v2727, %v2695
      %v2760 = vadd.f32 %v2728, %v2696
      %v2761 = vadd.f32 %v2729, %v2697
      %v2762 = vadd.f32 %v2730, %v2698
      %v2763 = vadd.f32 %v2731, %v2699
      %v2764 = vadd.f32 %v2732, %v2700
      %v2765 = vadd.f32 %v2733, %v2701
      %v2766 = vadd.f32 %v2734, %v2702
      %v2767 = vadd.f32 %v2735, %v2703
      %v2768 = vadd.f32 %v2736, %v2704
      %v2769 = vadd.f32 %v2737, %v2705
      %v2770 = vadd.f32 %v2738, %v2706
      %v2771 = vadd.f32 %v2739, %v2707
      %v2772 = vadd.f32 %v2740, %v2708
      %v2773 = vadd.f32 %v2741, %v2709
      %v2774 = vadd.f32 %v2742, %v2710
      %v2775 = vadd.f32 %v2743, %v2711
      %v2776 = vadd.f32 %v2744, %v2712
      %v2777 = vadd.f32 %v2745, %v2713
      %v2778 = vadd.f32 %v2746, %v2714
      %v2779 = vadd.f32 %v2747, %v2715
      %v2780 = vadd.f32 %v2748, %v2716
      %v2781 = vadd.f32 %v2749, %v2717
      %v2782 = vadd.f32 %v2750, %v2718
      %v2783 = vadd.f32 %v2751, %v2719
      %v2784 = vadd.f32 %v2752, %v2720
      %v2785 = vadd.f32 %v2753, %v2721
      %v2786 = vadd.f32 %v2754, %v2722
      %v2787 = vadd.f32 %v2755, %v2723
      %v2788 = vadd.f32 %v2756, %v2724
      %v2789 = vadd.f32 %v2757, %v2725
      %v2790 = vadd.f32 %v2758, %v2726
      %2791 = vst.msk [vmem:[%s170] sm:$0xff] %vm653, %v2759
      %2792 = vst.msk [vmem:[%s170 + $0x8] sm:$0xff] %vm653, %v2760
      %2793 = vst.msk [vmem:[%s170 + $0x10] sm:$0xff] %vm653, %v2761
      %2794 = vst.msk [vmem:[%s170 + $0x18] sm:$0xff] %vm653, %v2762
      %2795 = vst.msk [vmem:[%s170 + $0x20] sm:$0xff] %vm653, %v2763
      %2796 = vst.msk [vmem:[%s170 + $0x28] sm:$0xff] %vm653, %v2764
      %2797 = vst.msk [vmem:[%s170 + $0x30] sm:$0xff] %vm653, %v2765
      %2798 = vst.msk [vmem:[%s170 + $0x38] sm:$0xff] %vm653, %v2766
      %2799 = vst.msk [vmem:[%s170 + $0x40] sm:$0xff] %vm653, %v2767
      %2800 = vst.msk [vmem:[%s170 + $0x48] sm:$0xff] %vm653, %v2768
      %2801 = vst.msk [vmem:[%s170 + $0x50] sm:$0xff] %vm653, %v2769
      %2802 = vst.msk [vmem:[%s170 + $0x58] sm:$0xff] %vm653, %v2770
      %2803 = vst.msk [vmem:[%s170 + $0x60] sm:$0xff] %vm653, %v2771
      %2804 = vst.msk [vmem:[%s170 + $0x68] sm:$0xff] %vm653, %v2772
      %2805 = vst.msk [vmem:[%s170 + $0x70] sm:$0xff] %vm653, %v2773
      %2806 = vst.msk [vmem:[%s170 + $0x78] sm:$0xff] %vm653, %v2774
      %2807 = vst.msk [vmem:[%s170 + $0x80] sm:$0xff] %vm653, %v2775
      %2808 = vst.msk [vmem:[%s170 + $0x88] sm:$0xff] %vm653, %v2776
      %2809 = vst.msk [vmem:[%s170 + $0x90] sm:$0xff] %vm653, %v2777
      %2810 = vst.msk [vmem:[%s170 + $0x98] sm:$0xff] %vm653, %v2778
      %2811 = vst.msk [vmem:[%s170 + $0xa0] sm:$0xff] %vm653, %v2779
      %2812 = vst.msk [vmem:[%s170 + $0xa8] sm:$0xff] %vm653, %v2780
      %2813 = vst.msk [vmem:[%s170 + $0xb0] sm:$0xff] %vm653, %v2781
      %2814 = vst.msk [vmem:[%s170 + $0xb8] sm:$0xff] %vm653, %v2782
      %2815 = vst.msk [vmem:[%s170 + $0xc0] sm:$0xff] %vm653, %v2783
      %2816 = vst.msk [vmem:[%s170 + $0xc8] sm:$0xff] %vm653, %v2784
      %2817 = vst.msk [vmem:[%s170 + $0xd0] sm:$0xff] %vm653, %v2785
      %2818 = vst.msk [vmem:[%s170 + $0xd8] sm:$0xff] %vm653, %v2786
      %2819 = vst.msk [vmem:[%s170 + $0xe0] sm:$0xff] %vm653, %v2787
      %2820 = vst.msk [vmem:[%s170 + $0xe8] sm:$0xff] %vm653, %v2788
      %2821 = vst.msk [vmem:[%s170 + $0xf0] sm:$0xff] %vm653, %v2789
      %2822 = vst.msk [vmem:[%s170 + $0xf8] sm:$0xff] %vm653, %v2790
      %p2823 = scmp.lt.s32.totalorder %s14, 1
      %s2824 = scalar_select %p2823, %s14, 1
      %s2825 = smul.addr %s2824, 32
      %s2826 = smul.addr %s2825, 8
      %s2827 = scalar_lea.vmem %s3, %s2826
      // Predicated region
      $region33: #{tpu_custom_call.1} parent=31 // pred_check
        %p2828 = pneg %p100
      $region34: #{tpu_custom_call.1} parent=31 // pred_check_branch
        %2830 = sbr.rel (%p2828) target = $region36
      $region35: #{tpu_custom_call.1} parent=31 // pred_region
        _
      $region36: #{tpu_custom_call.1} parent=31 // pred_fallthru
        _
    $region32: #{tpu_custom_call.1} parent=5 // pred_fallthru
      _
    %p2831 = scmp.le.s32.totalorder 2, %s9
    // Predicated region
    $region37: #{tpu_custom_call.1} parent=5 // pred_check
      %p2832 = pneg %p2831
    $region38: #{tpu_custom_call.1} parent=5 // pred_check_branch
      %2834 = sbr.rel (%p2832) target = $region40
    $region39: #{tpu_custom_call.1} parent=5 // pred_region
      %s2835 = ssub.s32 %s9, 2
      // Predicated region
      $region41: #{tpu_custom_call.1} parent=39 // pred_check
        %p2836 = pneg %p106
      $region42: #{tpu_custom_call.1} parent=39 // pred_check_branch
        %2838 = sbr.rel (%p2836) target = $region44
      $region43: #{tpu_custom_call.1} parent=39 // pred_region
        %p2839 = scmp.lt.s32.totalorder %s15, 1
        %s2840 = scalar_select %p2839, %s15, 1
        %s2841 = smul.addr %s2840, 32
        %s2842 = smul.addr %s2841, 8
        %s2843 = scalar_lea.vmem %s3, %s2842
      $region44: #{tpu_custom_call.1} parent=39 // pred_fallthru
        _
    $region40: #{tpu_custom_call.1} parent=5 // pred_fallthru
      _
  $region6: #{tpu_custom_call.1} parent=0 // loop_footer
    %s13 = sadd.s32 1, %s9
  $region7: #{tpu_custom_call.1} parent=0 // loop_footer_branch
    %8 = sbr.rel target = $region3
  $region8: #{tpu_custom_call.1} parent=0 // loop_exit
    _

</llo_original>
